<compile_context>
chip_gen: v6e
topology: v6e:2x2x1
jax: 0.10.0
libtpu: 0.0.40
codegen_flags: <defaults>
</compile_context>

<pallas_src>
import jax
import jax.numpy as jnp
from jax.experimental import pallas as pl
from jax.experimental.pallas import tpu as pltpu


# ----------------------------- small math helpers -----------------------------

def _hsigmoid(v):
    # Module's own Hsigmoid: relu6(1.2*x + 3) / 6
    return jnp.clip(1.2 * v + 3.0, 0.0, 6.0) * (1.0 / 6.0)


def _nearest_up(x, s):
    """Nearest-neighbor upsample by integer factor s, NHWC. (Reference path only.)"""
    if s == 1:
        return x
    N, H, W, C = x.shape
    x = jnp.broadcast_to(x[:, :, None, :, None, :], (N, H, s, W, s, C))
    return x.reshape(N, H * s, W * s, C)


# ------------------------------ fused level kernel ------------------------------

def _make_level_kernel(H, W, Cin, Cm, Co, up, shortcut, with_skip):
    """One FPN level, fully fused:
         ins_conv : 1x1 conv (K=Cin MXU matmul) + SE + shortcut
         top-down : + nearest x2 upsample of the coarser level's output (in VMEM)
         inp_conv : 3x3 conv as ONE im2col matmul (K=9*Cm) + SE + shortcut
         output   : nearest x{up} upsample fused into the store, lane-packed as
                    (H*up, W, up*Co)  (== memory layout of (H*up, W*up, Co))
    """
    HW = H * W
    Hc, Wc = H // 2, W // 2
    inv_hw = 1.0 / float(HW)

    def kernel(*refs):
        if with_skip:
            (x_ref, skip_ref,
             w0_ref, a1_ref, ab1_ref, a2_ref, ab2_ref,
             w3_ref, c1_ref, cb1_ref, c2_ref, cb2_ref,
             out_ref, p_ref) = refs
        else:
            (x_ref,
             w0_ref, a1_ref, ab1_ref, a2_ref, ab2_ref,
             w3_ref, c1_ref, cb1_ref, c2_ref, cb2_ref,
             out_ref, p_ref) = refs

        # Global-average-pool as a ones-row matmul: runs on the MXU, not the XLU.
        ones = jnp.ones((1, HW), jnp.float32)

        # ---------------- ins_conv: 1x1 conv + SE + shortcut ----------------
        x2 = x_ref[0]                                                       # (HW, Cin)
        y = jnp.dot(x2, w0_ref[...], preferred_element_type=jnp.float32)    # (HW, Cm)

        pooled = jnp.dot(ones, y, preferred_element_type=jnp.float32) * inv_hw   # (1, Cm)
        s = jnp.dot(pooled, a1_ref[...], preferred_element_type=jnp.float32) + ab1_ref[...]
        s = jnp.maximum(s, 0.0)
        s = jnp.dot(s, a2_ref[...], preferred_element_type=jnp.float32) + ab2_ref[...]
        gate = _hsigmoid(s)
        # shortcut fused as one channel scale: x + x*gate = x*(1+gate)
        o = y * (gate + 1.0 if shortcut else gate)                          # (HW, Cm)

        # -------- fused top-down add: nearest x2 upsample of the coarse skip --------
        if with_skip:
            sk = skip_ref[0]                                                # (Hc, Wc, Cm)
            sk = jnp.broadcast_to(sk[:, None, :, None, :], (Hc, 2, Wc, 2, Cm))
            # full collapse to 2D: row order (hc, i, wc, j) == fine-grid (h, w) order
            o = o + sk.reshape(HW, Cm)

        # level output (lateral input of the next finer level / layer output)
        out_ref[...] = o.reshape(1, HW, Cm)

        # ---------------- inp_conv: 3x3 conv as ONE im2col matmul ----------------
        o3 = o.reshape(H, W, Cm)
        zc = jnp.zeros((H, 1, Cm), jnp.float32)
        zr = jnp.zeros((1, W + 2, Cm), jnp.float32)
        xp = jnp.concatenate([zc, o3, zc], axis=1)                          # (H, W+2, Cm)
        xp = jnp.concatenate([zr, xp, zr], axis=0)                          # (H+2, W+2, Cm)
        taps = [xp[dy:dy + H, dx:dx + W, :].reshape(HW, Cm)
                for dy in range(3) for dx in range(3)]
        patches = jnp.concatenate(taps, axis=-1)                            # (HW, 9*Cm)
        z = jnp.dot(patches, w3_ref[...], preferred_element_type=jnp.float32)   # (HW, Co)

        pooled2 = jnp.dot(ones, z, preferred_element_type=jnp.float32) * inv_hw
        t = jnp.dot(pooled2, c1_ref[...], preferred_element_type=jnp.float32) + cb1_ref[...]
        t = jnp.maximum(t, 0.0)
        t = jnp.dot(t, c2_ref[...], preferred_element_type=jnp.float32) + cb2_ref[...]
        gate2 = _hsigmoid(t)
        p = z * (gate2 + 1.0 if shortcut else gate2)                        # (HW, Co)

        # -------- fused nearest x{up} upsample + lane-packed store of p --------
        p3 = p.reshape(H, W, Co)
        if up > 1:
            # rows: duplicate via a new leading axis (leading-dim-only reshape, no relayout)
            p3 = jnp.broadcast_to(p3[:, None, :, :], (H, up, W, Co)).reshape(H * up, W, Co)
            # cols: `up` copies of the Co channel vector packed contiguously in lanes;
            # (H*up, W, up*Co) has exactly the memory layout of (H*up, W*up, Co).
            p3 = jnp.concatenate([p3] * up, axis=-1)                        # (H*up, W, up*Co)
        p_ref[...] = p3.reshape(1, H * up, W, up * Co)

    return kernel


# -------------------------------- level wrapper --------------------------------

def rse_level(x_nhwc, skip_coarse, ins_p, inp_p, up, shortcut=True):
    """One fused FPN level.

    x_nhwc      : (N, H, W, Cin) f32 backbone feature
    skip_coarse : (N, H//2, W//2, Cm) f32 output of the coarser level, or None
    returns     : (out_nhwc (N,H,W,Cm), p_full (N,H*up,W*up,Co))
    """
    N, H, W, Cin = x_nhwc.shape
    Cm = ins_p['w'].shape[1]          # FPN mid channels
    Co = inp_p['w'].shape[2]          # p channels (Cm // 4)
    Cr1 = ins_p['w1'].shape[1]
    Cr2 = inp_p['w1'].shape[1]
    with_skip = skip_coarse is not None

    x2 = x_nhwc.reshape(N, H * W, Cin)        # free: NHWC is already contiguous
    w3 = inp_p['w'].reshape(9 * Cm, Co)       # im2col weight (tap-major, then cin)

    kernel = _make_level_kernel(H, W, Cin, Cm, Co, up, shortcut, with_skip)

    args = [x2]
    in_specs = [pl.BlockSpec((1, H * W, Cin), lambda n: (n, 0, 0))]
    if with_skip:
        args.append(skip_coarse)
        in_specs.append(pl.BlockSpec((1, H // 2, W // 2, Cm), lambda n: (n, 0, 0, 0)))
    args += [ins_p['w'], ins_p['w1'], ins_p['b1'], ins_p['w2'], ins_p['b2'],
             w3, inp_p['w1'], inp_p['b1'], inp_p['w2'], inp_p['b2']]

    def _fixed(_n):
        return (0, 0)

    in_specs += [
        pl.BlockSpec((Cin, Cm), _fixed),
        pl.BlockSpec((Cm, Cr1), _fixed),
        pl.BlockSpec((1, Cr1), _fixed),
        pl.BlockSpec((Cr1, Cm), _fixed),
        pl.BlockSpec((1, Cm), _fixed),
        pl.BlockSpec((9 * Cm, Co), _fixed),
        pl.BlockSpec((Co, Cr2), _fixed),
        pl.BlockSpec((1, Cr2), _fixed),
        pl.BlockSpec((Cr2, Co), _fixed),
        pl.BlockSpec((1, Co), _fixed),
    ]

    out_flat, p_packed = pl.pallas_call(
        kernel,
        out_shape=(jax.ShapeDtypeStruct((N, H * W, Cm), jnp.float32),
                   jax.ShapeDtypeStruct((N, H * up, W, up * Co), jnp.float32)),
        grid=(N,),
        in_specs=in_specs,
        out_specs=(pl.BlockSpec((1, H * W, Cm), lambda n: (n, 0, 0)),
                   pl.BlockSpec((1, H * up, W, up * Co), lambda n: (n, 0, 0, 0))),
        compiler_params=pltpu.CompilerParams(dimension_semantics=("parallel",)),
    )(*args)

    out_nhwc = out_flat.reshape(N, H, W, Cm)            # free view
    p_full = p_packed.reshape(N, H * up, W * up, Co)    # free view (same memory layout)
    return out_nhwc, p_full


# --------------------------------- RSEFPN forward ---------------------------------

def rsefpn(feats_nchw, params, shortcut=True):
    """RSEFPN forward. feats_nchw: [c2, c3, c4, c5] NCHW float32. Returns NCHW fuse."""
    xs = [jnp.transpose(f, (0, 2, 3, 1)).astype(jnp.float32) for f in feats_nchw]
    c2, c3, c4, c5 = xs
    ins, inp = params['ins'], params['inp']

    # coarse -> fine; each call fuses: 1x1+SE+shortcut, +up2(skip), 3x3+SE+shortcut, up{8/4/2/1}
    in5,  p5 = rse_level(c5, None, ins[3], inp[3], up=8, shortcut=shortcut)
    out4, p4 = rse_level(c4, in5,  ins[2], inp[2], up=4, shortcut=shortcut)
    out3, p3 = rse_level(c3, out4, ins[1], inp[1], up=2, shortcut=shortcut)
    out2, p2 = rse_level(c2, out3, ins[0], inp[0], up=1, shortcut=shortcut)
    del out2  # not consumed further (matches PyTorch graph)

    fuse = jnp.concatenate([p5, p4, p3, p2], axis=-1)   # (N, H2, W2, 4*Co) NHWC
    return jnp.transpose(fuse, (0, 3, 1, 2))            # back to NCHW


# ---------------------------- pure-JAX reference (check) ----------------------------

def _se_ref(y, p):
    pooled = jnp.mean(y, axis=(1, 2))                    # (N, C)
    s = jnp.maximum(pooled @ p['w1'] + p['b1'], 0.0)
    s = s @ p['w2'] + p['b2']
    return y * _hsigmoid(s)[:, None, None, :]


def _rse1x1_ref(x, p, shortcut):
    y = jnp.einsum('nhwc,cd->nhwd', x, p['w'])
    se = _se_ref(y, p)
    return y + se if shortcut else se


def _rse3x3_ref(x, p, shortcut):
    N, H, W, Cin = x.shape
    Cout = p['w'].shape[2]
    xp = jnp.pad(x, ((0, 0), (1, 1), (1, 1), (0, 0)))
    acc = jnp.zeros((N, H, W, Cout), jnp.float32)
    for dy in range(3):
        for dx in range(3):
            acc = acc + jnp.einsum('nhwc,cd->nhwd',
                                   xp[:, dy:dy + H, dx:dx + W, :], p['w'][dy * 3 + dx])
    se = _se_ref(acc, p)
    return acc + se if shortcut else se


def rsefpn_ref(feats_nchw, params, shortcut=True):
    xs = [jnp.transpose(f, (0, 2, 3, 1)).astype(jnp.float32) for f in feats_nchw]
    c2, c3, c4, c5 = xs
    ins, inp = params['ins'], params['inp']
    in5 = _rse1x1_ref(c5, ins[3], shortcut)
    in4 = _rse1x1_ref(c4, ins[2], shortcut)
    in3 = _rse1x1_ref(c3, ins[1], shortcut)
    in2 = _rse1x1_ref(c2, ins[0], shortcut)
    out4 = in4 + _nearest_up(in5, 2)
    out3 = in3 + _nearest_up(out4, 2)
    out2 = in2 + _nearest_up(out3, 2)
    p5 = _rse3x3_ref(in5, inp[3], shortcut)
    p4 = _rse3x3_ref(out4, inp[2], shortcut)
    p3 = _rse3x3_ref(out3, inp[1], shortcut)
    p2 = _rse3x3_ref(out2, inp[0], shortcut)
    p5 = _nearest_up(p5, 8)
    p4 = _nearest_up(p4, 4)
    p3 = _nearest_up(p3, 2)
    fuse = jnp.concatenate([p5, p4, p3, p2], axis=-1)
    return jnp.transpose(fuse, (0, 3, 1, 2))


# ------------------------------------ params ------------------------------------

def _rse_params(key, cin, cout, k, reduction=4):
    cr = max(cout // reduction, 1)
    ks = jax.random.split(key, 5)
    rnd = lambda kk, shape, s=0.1: jax.random.normal(kk, shape, jnp.float32) * s
    if k == 1:
        w = rnd(ks[0], (cin, cout))             # Conv2d(cin,cout,1) weight as (cin,cout)
    else:
        w = rnd(ks[0], (k * k, cin, cout))      # Conv2d(cin,cout,3) weight as (ky*kx,cin,cout)
    return dict(
        w=w,
        w1=rnd(ks[1], (cout, cr)), b1=rnd(ks[2], (1, cr)),
        w2=rnd(ks[3], (cr, cout)), b2=rnd(ks[4], (1, cout)),
    )


def make_params(key, in_channels, out_ch):
    keys = jax.random.split(key, 2 * len(in_channels))
    ins = [_rse_params(keys[i], in_channels[i], out_ch, k=1) for i in range(len(in_channels))]
    inp = [_rse_params(keys[len(in_channels) + i], out_ch, out_ch // 4, k=3)
           for i in range(len(in_channels))]
    return dict(ins=ins, inp=inp)


# ------------------------------------- main -------------------------------------

if __name__ == "__main__":
    key = jax.random.PRNGKey(0)
    kf, kp = jax.random.split(key)

    # RSEFPN(in_channels=[16,24,32,48], out_channels=64, shortcut=True)
    N = 2
    in_channels = [16, 24, 32, 48]
    out_ch = 64
    spatials = [16, 8, 4, 2]          # c2..c5 feature-map sizes (strides 4,8,16,32)

    fkeys = jax.random.split(kf, 4)
    feats = [jax.random.normal(fkeys[i], (N, in_channels[i], spatials[i], spatials[i]),
                               jnp.float32)
             for i in range(4)]
    params = make_params(kp, in_channels, out_ch)

    out = rsefpn(feats, params, shortcut=True)
    out = jax.block_until_ready(out)

    ref = rsefpn_ref(feats, params, shortcut=True)
    assert out.shape == (N, out_ch, spatials[0], spatials[0]), out.shape
    err = float(jnp.max(jnp.abs(out - ref)))
    assert jnp.allclose(out, ref, atol=2e-4, rtol=2e-4), err

    print("KERNEL_OK")
</pallas_src>

<mosaic_0001>
module attributes {stable_mosaic.version = 11 : i64} {
  func.func @kernel(%arg0: i32, %arg1: memref<1x4x48xf32, #tpu.memory_space<vmem>>, %arg2: memref<48x64xf32, #tpu.memory_space<vmem>>, %arg3: memref<64x16xf32, #tpu.memory_space<vmem>>, %arg4: memref<1x16xf32, #tpu.memory_space<vmem>>, %arg5: memref<16x64xf32, #tpu.memory_space<vmem>>, %arg6: memref<1x64xf32, #tpu.memory_space<vmem>>, %arg7: memref<576x16xf32, #tpu.memory_space<vmem>>, %arg8: memref<16x4xf32, #tpu.memory_space<vmem>>, %arg9: memref<1x4xf32, #tpu.memory_space<vmem>>, %arg10: memref<4x16xf32, #tpu.memory_space<vmem>>, %arg11: memref<1x16xf32, #tpu.memory_space<vmem>>, %arg12: memref<1x4x64xf32, #tpu.memory_space<vmem>>, %arg13: memref<1x16x2x128xf32, #tpu.memory_space<vmem>>) attributes {dimension_semantics = [#tpu.dimension_semantics<parallel>], iteration_bounds = array<i64: 2>, scalar_prefetch = 0 : i64, scratch_operands = 0 : i64, tpu.core_type = #tpu.core_type<tc>, window_params = [{transform_indices = @transform_0, window_bounds = array<i64: 1, 4, 48>}, {pipeline_mode = #tpu.pipeline_mode<synchronous>, transform_indices = @transform_1, window_bounds = array<i64: 48, 64>}, {pipeline_mode = #tpu.pipeline_mode<synchronous>, transform_indices = @transform_2, window_bounds = array<i64: 64, 16>}, {pipeline_mode = #tpu.pipeline_mode<synchronous>, transform_indices = @transform_3, window_bounds = array<i64: 1, 16>}, {pipeline_mode = #tpu.pipeline_mode<synchronous>, transform_indices = @transform_4, window_bounds = array<i64: 16, 64>}, {pipeline_mode = #tpu.pipeline_mode<synchronous>, transform_indices = @transform_5, window_bounds = array<i64: 1, 64>}, {pipeline_mode = #tpu.pipeline_mode<synchronous>, transform_indices = @transform_6, window_bounds = array<i64: 576, 16>}, {pipeline_mode = #tpu.pipeline_mode<synchronous>, transform_indices = @transform_7, window_bounds = array<i64: 16, 4>}, {pipeline_mode = #tpu.pipeline_mode<synchronous>, transform_indices = @transform_8, window_bounds = array<i64: 1, 4>}, {pipeline_mode = #tpu.pipeline_mode<synchronous>, transform_indices = @transform_9, window_bounds = array<i64: 4, 16>}, {pipeline_mode = #tpu.pipeline_mode<synchronous>, transform_indices = @transform_10, window_bounds = array<i64: 1, 16>}, {transform_indices = @transform_11, window_bounds = array<i64: 1, 4, 64>}, {transform_indices = @transform_12, window_bounds = array<i64: 1, 16, 2, 128>}]} {
    %cst = arith.constant 1.000000e+00 : f32
    %0 = vector.broadcast %cst : f32 to vector<1x4xf32>
    %c0 = arith.constant 0 : index
    %c0_0 = arith.constant 0 : index
    %c0_1 = arith.constant 0 : index
    %1 = vector.load %arg1[%c0, %c0_0, %c0_1] : memref<1x4x48xf32, #tpu.memory_space<vmem>>, vector<1x4x48xf32>
    %2 = vector.shape_cast %1 : vector<1x4x48xf32> to vector<4x48xf32>
    %c0_2 = arith.constant 0 : index
    %c0_3 = arith.constant 0 : index
    %3 = vector.load %arg2[%c0_2, %c0_3] : memref<48x64xf32, #tpu.memory_space<vmem>>, vector<48x64xf32>
    %cst_4 = arith.constant dense<0.000000e+00> : vector<4x64xf32>
    %4 = tpu.matmul %2, %3, %cst_4 {dimension_numbers = #tpu.dot_dimension_numbers<[1], [0], [0], [1], [0, 0, 1, 1], [], []>} : vector<4x48xf32>, vector<48x64xf32>, vector<4x64xf32> -> vector<4x64xf32>
    %cst_5 = arith.constant dense<0.000000e+00> : vector<1x64xf32>
    %5 = tpu.matmul %0, %4, %cst_5 {dimension_numbers = #tpu.dot_dimension_numbers<[1], [0], [0], [1], [0, 0, 1, 1], [], []>} : vector<1x4xf32>, vector<4x64xf32>, vector<1x64xf32> -> vector<1x64xf32>
    %cst_6 = arith.constant 2.500000e-01 : f32
    %6 = vector.broadcast %cst_6 : f32 to vector<1x64xf32>
    %7 = arith.mulf %5, %6 : vector<1x64xf32>
    %c0_7 = arith.constant 0 : index
    %c0_8 = arith.constant 0 : index
    %8 = vector.load %arg3[%c0_7, %c0_8] : memref<64x16xf32, #tpu.memory_space<vmem>>, vector<64x16xf32>
    %cst_9 = arith.constant dense<0.000000e+00> : vector<1x16xf32>
    %9 = tpu.matmul %7, %8, %cst_9 {dimension_numbers = #tpu.dot_dimension_numbers<[1], [0], [0], [1], [0, 0, 1, 1], [], []>} : vector<1x64xf32>, vector<64x16xf32>, vector<1x16xf32> -> vector<1x16xf32>
    %c0_10 = arith.constant 0 : index
    %c0_11 = arith.constant 0 : index
    %10 = vector.load %arg4[%c0_10, %c0_11] : memref<1x16xf32, #tpu.memory_space<vmem>>, vector<1x16xf32>
    %11 = arith.addf %9, %10 : vector<1x16xf32>
    %cst_12 = arith.constant 0.000000e+00 : f32
    %12 = vector.broadcast %cst_12 : f32 to vector<1x16xf32>
    %13 = arith.maximumf %11, %12 : vector<1x16xf32>
    %c0_13 = arith.constant 0 : index
    %c0_14 = arith.constant 0 : index
    %14 = vector.load %arg5[%c0_13, %c0_14] : memref<16x64xf32, #tpu.memory_space<vmem>>, vector<16x64xf32>
    %cst_15 = arith.constant dense<0.000000e+00> : vector<1x64xf32>
    %15 = tpu.matmul %13, %14, %cst_15 {dimension_numbers = #tpu.dot_dimension_numbers<[1], [0], [0], [1], [0, 0, 1, 1], [], []>} : vector<1x16xf32>, vector<16x64xf32>, vector<1x64xf32> -> vector<1x64xf32>
    %c0_16 = arith.constant 0 : index
    %c0_17 = arith.constant 0 : index
    %16 = vector.load %arg6[%c0_16, %c0_17] : memref<1x64xf32, #tpu.memory_space<vmem>>, vector<1x64xf32>
    %17 = arith.addf %15, %16 : vector<1x64xf32>
    %cst_18 = arith.constant 1.200000e+00 : f32
    %18 = vector.broadcast %cst_18 : f32 to vector<1x64xf32>
    %19 = arith.mulf %18, %17 : vector<1x64xf32>
    %cst_19 = arith.constant 3.000000e+00 : f32
    %20 = vector.broadcast %cst_19 : f32 to vector<1x64xf32>
    %21 = arith.addf %19, %20 : vector<1x64xf32>
    %cst_20 = arith.constant 0.000000e+00 : f32
    %cst_21 = arith.constant 6.000000e+00 : f32
    %22 = vector.broadcast %cst_20 : f32 to vector<1x64xf32>
    %23 = arith.maximumf %22, %21 : vector<1x64xf32>
    %24 = vector.broadcast %cst_21 : f32 to vector<1x64xf32>
    %25 = arith.minimumf %24, %23 : vector<1x64xf32>
    %cst_22 = arith.constant 0.166666672 : f32
    %26 = vector.broadcast %cst_22 : f32 to vector<1x64xf32>
    %27 = arith.mulf %25, %26 : vector<1x64xf32>
    %cst_23 = arith.constant 1.000000e+00 : f32
    %28 = vector.broadcast %cst_23 : f32 to vector<1x64xf32>
    %29 = arith.addf %27, %28 : vector<1x64xf32>
    %30 = vector.broadcast %29 : vector<1x64xf32> to vector<4x64xf32>
    %31 = arith.mulf %4, %30 : vector<4x64xf32>
    %32 = vector.shape_cast %31 : vector<4x64xf32> to vector<1x4x64xf32>
    %c0_24 = arith.constant 0 : index
    %c0_25 = arith.constant 0 : index
    %c0_26 = arith.constant 0 : index
    %33 = vector.load %arg12[%c0_24, %c0_25, %c0_26] : memref<1x4x64xf32, #tpu.memory_space<vmem>>, vector<1x4x64xf32>
    tpu.vector_store %arg12[%c0_24, %c0_25, %c0_26], %32 {strides = array<i32>} : memref<1x4x64xf32, #tpu.memory_space<vmem>>, vector<1x4x64xf32>,
    %34 = vector.shape_cast %31 : vector<4x64xf32> to vector<2x2x64xf32>
    %cst_27 = arith.constant 0.000000e+00 : f32
    %35 = vector.broadcast %cst_27 : f32 to vector<2x1x64xf32>
    %cst_28 = arith.constant 0.000000e+00 : f32
    %36 = vector.broadcast %cst_28 : f32 to vector<1x4x64xf32>
    %37 = tpu.concatenate %35, %34, %35 in 1 : vector<2x1x64xf32>, vector<2x2x64xf32>, vector<2x1x64xf32> -> vector<2x4x64xf32>
    %38 = tpu.concatenate %36, %37, %36 in 0 : vector<1x4x64xf32>, vector<2x4x64xf32>, vector<1x4x64xf32> -> vector<4x4x64xf32>
    %39 = vector.extract_strided_slice %38 {offsets = [0, 0, 0], sizes = [2, 2, 64], strides = [1, 1, 1]} : vector<4x4x64xf32> to vector<2x2x64xf32>
    %40 = vector.shape_cast %39 : vector<2x2x64xf32> to vector<4x64xf32>
    %41 = vector.extract_strided_slice %38 {offsets = [0, 1, 0], sizes = [2, 2, 64], strides = [1, 1, 1]} : vector<4x4x64xf32> to vector<2x2x64xf32>
    %42 = vector.shape_cast %41 : vector<2x2x64xf32> to vector<4x64xf32>
    %43 = vector.extract_strided_slice %38 {offsets = [0, 2, 0], sizes = [2, 2, 64], strides = [1, 1, 1]} : vector<4x4x64xf32> to vector<2x2x64xf32>
    %44 = vector.shape_cast %43 : vector<2x2x64xf32> to vector<4x64xf32>
    %45 = vector.extract_strided_slice %38 {offsets = [1, 0, 0], sizes = [2, 2, 64], strides = [1, 1, 1]} : vector<4x4x64xf32> to vector<2x2x64xf32>
    %46 = vector.shape_cast %45 : vector<2x2x64xf32> to vector<4x64xf32>
    %47 = vector.extract_strided_slice %38 {offsets = [1, 1, 0], sizes = [2, 2, 64], strides = [1, 1, 1]} : vector<4x4x64xf32> to vector<2x2x64xf32>
    %48 = vector.shape_cast %47 : vector<2x2x64xf32> to vector<4x64xf32>
    %49 = vector.extract_strided_slice %38 {offsets = [1, 2, 0], sizes = [2, 2, 64], strides = [1, 1, 1]} : vector<4x4x64xf32> to vector<2x2x64xf32>
    %50 = vector.shape_cast %49 : vector<2x2x64xf32> to vector<4x64xf32>
    %51 = vector.extract_strided_slice %38 {offsets = [2, 0, 0], sizes = [2, 2, 64], strides = [1, 1, 1]} : vector<4x4x64xf32> to vector<2x2x64xf32>
    %52 = vector.shape_cast %51 : vector<2x2x64xf32> to vector<4x64xf32>
    %53 = vector.extract_strided_slice %38 {offsets = [2, 1, 0], sizes = [2, 2, 64], strides = [1, 1, 1]} : vector<4x4x64xf32> to vector<2x2x64xf32>
    %54 = vector.shape_cast %53 : vector<2x2x64xf32> to vector<4x64xf32>
    %55 = vector.extract_strided_slice %38 {offsets = [2, 2, 0], sizes = [2, 2, 64], strides = [1, 1, 1]} : vector<4x4x64xf32> to vector<2x2x64xf32>
    %56 = vector.shape_cast %55 : vector<2x2x64xf32> to vector<4x64xf32>
    %57 = tpu.concatenate %40, %42, %44, %46, %48, %50, %52, %54, %56 in 1 : vector<4x64xf32>, vector<4x64xf32>, vector<4x64xf32>, vector<4x64xf32>, vector<4x64xf32>, vector<4x64xf32>, vector<4x64xf32>, vector<4x64xf32>, vector<4x64xf32> -> vector<4x576xf32>
    %c0_29 = arith.constant 0 : index
    %c0_30 = arith.constant 0 : index
    %58 = vector.load %arg7[%c0_29, %c0_30] : memref<576x16xf32, #tpu.memory_space<vmem>>, vector<576x16xf32>
    %cst_31 = arith.constant dense<0.000000e+00> : vector<4x16xf32>
    %59 = tpu.matmul %57, %58, %cst_31 {dimension_numbers = #tpu.dot_dimension_numbers<[1], [0], [0], [1], [0, 0, 1, 1], [], []>} : vector<4x576xf32>, vector<576x16xf32>, vector<4x16xf32> -> vector<4x16xf32>
    %cst_32 = arith.constant dense<0.000000e+00> : vector<1x16xf32>
    %60 = tpu.matmul %0, %59, %cst_32 {dimension_numbers = #tpu.dot_dimension_numbers<[1], [0], [0], [1], [0, 0, 1, 1], [], []>} : vector<1x4xf32>, vector<4x16xf32>, vector<1x16xf32> -> vector<1x16xf32>
    %cst_33 = arith.constant 2.500000e-01 : f32
    %61 = vector.broadcast %cst_33 : f32 to vector<1x16xf32>
    %62 = arith.mulf %60, %61 : vector<1x16xf32>
    %c0_34 = arith.constant 0 : index
    %c0_35 = arith.constant 0 : index
    %63 = vector.load %arg8[%c0_34, %c0_35] : memref<16x4xf32, #tpu.memory_space<vmem>>, vector<16x4xf32>
    %cst_36 = arith.constant dense<0.000000e+00> : vector<1x4xf32>
    %64 = tpu.matmul %62, %63, %cst_36 {dimension_numbers = #tpu.dot_dimension_numbers<[1], [0], [0], [1], [0, 0, 1, 1], [], []>} : vector<1x16xf32>, vector<16x4xf32>, vector<1x4xf32> -> vector<1x4xf32>
    %c0_37 = arith.constant 0 : index
    %c0_38 = arith.constant 0 : index
    %65 = vector.load %arg9[%c0_37, %c0_38] : memref<1x4xf32, #tpu.memory_space<vmem>>, vector<1x4xf32>
    %66 = arith.addf %64, %65 : vector<1x4xf32>
    %cst_39 = arith.constant 0.000000e+00 : f32
    %67 = vector.broadcast %cst_39 : f32 to vector<1x4xf32>
    %68 = arith.maximumf %66, %67 : vector<1x4xf32>
    %c0_40 = arith.constant 0 : index
    %c0_41 = arith.constant 0 : index
    %69 = vector.load %arg10[%c0_40, %c0_41] : memref<4x16xf32, #tpu.memory_space<vmem>>, vector<4x16xf32>
    %cst_42 = arith.constant dense<0.000000e+00> : vector<1x16xf32>
    %70 = tpu.matmul %68, %69, %cst_42 {dimension_numbers = #tpu.dot_dimension_numbers<[1], [0], [0], [1], [0, 0, 1, 1], [], []>} : vector<1x4xf32>, vector<4x16xf32>, vector<1x16xf32> -> vector<1x16xf32>
    %c0_43 = arith.constant 0 : index
    %c0_44 = arith.constant 0 : index
    %71 = vector.load %arg11[%c0_43, %c0_44] : memref<1x16xf32, #tpu.memory_space<vmem>>, vector<1x16xf32>
    %72 = arith.addf %70, %71 : vector<1x16xf32>
    %cst_45 = arith.constant 1.200000e+00 : f32
    %73 = vector.broadcast %cst_45 : f32 to vector<1x16xf32>
    %74 = arith.mulf %73, %72 : vector<1x16xf32>
    %cst_46 = arith.constant 3.000000e+00 : f32
    %75 = vector.broadcast %cst_46 : f32 to vector<1x16xf32>
    %76 = arith.addf %74, %75 : vector<1x16xf32>
    %cst_47 = arith.constant 0.000000e+00 : f32
    %cst_48 = arith.constant 6.000000e+00 : f32
    %77 = vector.broadcast %cst_47 : f32 to vector<1x16xf32>
    %78 = arith.maximumf %77, %76 : vector<1x16xf32>
    %79 = vector.broadcast %cst_48 : f32 to vector<1x16xf32>
    %80 = arith.minimumf %79, %78 : vector<1x16xf32>
    %cst_49 = arith.constant 0.166666672 : f32
    %81 = vector.broadcast %cst_49 : f32 to vector<1x16xf32>
    %82 = arith.mulf %80, %81 : vector<1x16xf32>
    %cst_50 = arith.constant 1.000000e+00 : f32
    %83 = vector.broadcast %cst_50 : f32 to vector<1x16xf32>
    %84 = arith.addf %82, %83 : vector<1x16xf32>
    %85 = vector.broadcast %84 : vector<1x16xf32> to vector<4x16xf32>
    %86 = arith.mulf %59, %85 : vector<4x16xf32>
    %87 = vector.shape_cast %86 : vector<4x16xf32> to vector<2x2x16xf32>
    %88 = vector.shape_cast %87 : vector<2x2x16xf32> to vector<2x1x2x16xf32>
    %89 = vector.shape_cast %88 : vector<2x1x2x16xf32> to vector<2x1x2x16xf32>
    %90 = vector.broadcast %89 : vector<2x1x2x16xf32> to vector<2x8x2x16xf32>
    %91 = vector.shape_cast %90 : vector<2x8x2x16xf32> to vector<16x2x16xf32>
    %92 = tpu.concatenate %91, %91, %91, %91, %91, %91, %91, %91 in 2 : vector<16x2x16xf32>, vector<16x2x16xf32>, vector<16x2x16xf32>, vector<16x2x16xf32>, vector<16x2x16xf32>, vector<16x2x16xf32>, vector<16x2x16xf32>, vector<16x2x16xf32> -> vector<16x2x128xf32>
    %93 = vector.shape_cast %92 : vector<16x2x128xf32> to vector<1x16x2x128xf32>
    %c0_51 = arith.constant 0 : index
    %c0_52 = arith.constant 0 : index
    %c0_53 = arith.constant 0 : index
    %c0_54 = arith.constant 0 : index
    %94 = vector.load %arg13[%c0_51, %c0_52, %c0_53, %c0_54] : memref<1x16x2x128xf32, #tpu.memory_space<vmem>>, vector<1x16x2x128xf32>
    tpu.vector_store %arg13[%c0_51, %c0_52, %c0_53, %c0_54], %93 {strides = array<i32>} : memref<1x16x2x128xf32, #tpu.memory_space<vmem>>, vector<1x16x2x128xf32>,
    return
  }
  func.func @transform_0(%arg0: i32) -> (i32, i32, i32) {
    %c0_i32 = arith.constant 0 : i32
    %c0_i32_0 = arith.constant 0 : i32
    %c0_i32_1 = arith.constant 0 : i32
    return %arg0, %c0_i32, %c0_i32_0 : i32, i32, i32
  }
  func.func @transform_1(%arg0: i32) -> (i32, i32) {
    %c0_i32 = arith.constant 0 : i32
    %c0_i32_0 = arith.constant 0 : i32
    %c0_i32_1 = arith.constant 0 : i32
    return %c0_i32, %c0_i32_0 : i32, i32
  }
  func.func @transform_2(%arg0: i32) -> (i32, i32) {
    %c0_i32 = arith.constant 0 : i32
    %c0_i32_0 = arith.constant 0 : i32
    %c0_i32_1 = arith.constant 0 : i32
    return %c0_i32, %c0_i32_0 : i32, i32
  }
  func.func @transform_3(%arg0: i32) -> (i32, i32) {
    %c0_i32 = arith.constant 0 : i32
    %c0_i32_0 = arith.constant 0 : i32
    %c0_i32_1 = arith.constant 0 : i32
    return %c0_i32, %c0_i32_0 : i32, i32
  }
  func.func @transform_4(%arg0: i32) -> (i32, i32) {
    %c0_i32 = arith.constant 0 : i32
    %c0_i32_0 = arith.constant 0 : i32
    %c0_i32_1 = arith.constant 0 : i32
    return %c0_i32, %c0_i32_0 : i32, i32
  }
  func.func @transform_5(%arg0: i32) -> (i32, i32) {
    %c0_i32 = arith.constant 0 : i32
    %c0_i32_0 = arith.constant 0 : i32
    %c0_i32_1 = arith.constant 0 : i32
    return %c0_i32, %c0_i32_0 : i32, i32
  }
  func.func @transform_6(%arg0: i32) -> (i32, i32) {
    %c0_i32 = arith.constant 0 : i32
    %c0_i32_0 = arith.constant 0 : i32
    %c0_i32_1 = arith.constant 0 : i32
    return %c0_i32, %c0_i32_0 : i32, i32
  }
  func.func @transform_7(%arg0: i32) -> (i32, i32) {
    %c0_i32 = arith.constant 0 : i32
    %c0_i32_0 = arith.constant 0 : i32
    %c0_i32_1 = arith.constant 0 : i32
    return %c0_i32, %c0_i32_0 : i32, i32
  }
  func.func @transform_8(%arg0: i32) -> (i32, i32) {
    %c0_i32 = arith.constant 0 : i32
    %c0_i32_0 = arith.constant 0 : i32
    %c0_i32_1 = arith.constant 0 : i32
    return %c0_i32, %c0_i32_0 : i32, i32
  }
  func.func @transform_9(%arg0: i32) -> (i32, i32) {
    %c0_i32 = arith.constant 0 : i32
    %c0_i32_0 = arith.constant 0 : i32
    %c0_i32_1 = arith.constant 0 : i32
    return %c0_i32, %c0_i32_0 : i32, i32
  }
  func.func @transform_10(%arg0: i32) -> (i32, i32) {
    %c0_i32 = arith.constant 0 : i32
    %c0_i32_0 = arith.constant 0 : i32
    %c0_i32_1 = arith.constant 0 : i32
    return %c0_i32, %c0_i32_0 : i32, i32
  }
  func.func @transform_11(%arg0: i32) -> (i32, i32, i32) {
    %c0_i32 = arith.constant 0 : i32
    %c0_i32_0 = arith.constant 0 : i32
    %c0_i32_1 = arith.constant 0 : i32
    return %arg0, %c0_i32, %c0_i32_0 : i32, i32, i32
  }
  func.func @transform_12(%arg0: i32) -> (i32, i32, i32, i32) {
    %c0_i32 = arith.constant 0 : i32
    %c0_i32_0 = arith.constant 0 : i32
    %c0_i32_1 = arith.constant 0 : i32
    %c0_i32_2 = arith.constant 0 : i32
    return %arg0, %c0_i32, %c0_i32_0, %c0_i32_1 : i32, i32, i32, i32
  }
}

</mosaic_0001>

<llo_original>
// kernel: tpu_custom_call.1
$region0: #{tpu_custom_call.1}
  #allocation0 [shape = 'u32[]', space=smem, size = 0x4, offset = 0x4, fixed_abs, tag = 'smem constant byte address 0x4 - core index']
  #allocation1 [shape = 'u32[144,128]{1,0:T(1,128)}', space=vmem, size = 0x12000, scoped, tag = 'internal scratch']
  %s0 = inlined_call_operand.vmem [shape: f32[2,4,48], index: 0, kind: input, shape index: {}]
  %s1 = inlined_call_operand.vmem [shape: f32[48,64], index: 1, kind: input, shape index: {}]
  %s2 = inlined_call_operand.vmem [shape: f32[64,16], index: 2, kind: input, shape index: {}]
  %s3 = inlined_call_operand.vmem [shape: f32[1,16], index: 3, kind: input, shape index: {}]
  %s4 = inlined_call_operand.vmem [shape: f32[16,64], index: 4, kind: input, shape index: {}]
  %s5 = inlined_call_operand.vmem [shape: f32[1,64], index: 5, kind: input, shape index: {}]
  %s6 = inlined_call_operand.vmem [shape: f32[576,16], index: 6, kind: input, shape index: {}]
  %s7 = inlined_call_operand.vmem [shape: f32[16,4], index: 7, kind: input, shape index: {}]
  %s8 = inlined_call_operand.vmem [shape: f32[1,4], index: 8, kind: input, shape index: {}]
  %s9 = inlined_call_operand.vmem [shape: f32[4,16], index: 9, kind: input, shape index: {}]
  %s10 = inlined_call_operand.vmem [shape: f32[1,16], index: 10, kind: input, shape index: {}]
  %s11 = inlined_call_operand.hbm [shape: f32[2,4,64], index: 11, kind: output, shape index: {0}]
  %s12 = inlined_call_operand.hbm [shape: f32[2,16,2,128], index: 12, kind: output, shape index: {1}]
  %13 = xla_tuple %s11, %s12
  %s14 = sld [smem:[#allocation0]]
  $region85: #{tpu_custom_call.1} parent=0
    _
  %s16 = ssub.s32 1, %s14
  %s17 = scalar_select 0, %s16, %s14
  $region1: #{tpu_custom_call.1} parent=0
    #allocation2 [shape = 'u8[4096]{0}', space=vmem, size = 0x1000, scoped, tag = 'output window, operand 0']
    #allocation3 [shape = 's32[2]{0}', space=sflag, size = 0x8, scoped, tag = 'scoped memory for tpu_custom_call.1']
    #allocation4 [shape = 'u8[32768]{0}', space=vmem, size = 0x8000, scoped, tag = 'output window, operand 1']
    #allocation5 [shape = 's32[2]{0}', space=sflag, size = 0x8, scoped, tag = 'scoped memory for tpu_custom_call.1']
    %18 = vsyncpa [#allocation3], 0
    %s19 = scalar_lea.sflag [#allocation3], 1
    %20 = vsyncpa %s19, 0
    %21 = vsyncpa [#allocation5], 0
    %s22 = scalar_lea.sflag [#allocation5], 1
    %23 = vsyncpa %s22, 0
    loop: start=0, step=1, limit=4
    $region2: #{tpu_custom_call.1} parent=1 // loop_pre_header
      _
    $region3: #{tpu_custom_call.1} parent=1 // loop_header
      %s25 = sphi 0, %s29
      %p26 = scmp.ge.s32.totalorder %s25, 4
      %s35 = sphi 0, %s37
      %s38 = sphi 0, %s35
      %s39 = sphi 0, %s38
      %s55 = sphi 0, %s39
      %s59 = sphi 0, %s59
      %s61 = sphi 0, %s59
      %s62 = sphi 0, %s61
      %s76 = sphi 0, %s62
      %s80 = sphi 0, %s80
      %s82 = sphi 0, %s80
      %s83 = sphi 0, %s82
      %s97 = sphi 0, %s83
      %s101 = sphi 0, %s101
      %s103 = sphi 0, %s101
      %s104 = sphi 0, %s103
      %s118 = sphi 0, %s104
      %s122 = sphi 0, %s122
      %s124 = sphi 0, %s122
      %s125 = sphi 0, %s124
      %s139 = sphi 0, %s125
      %s143 = sphi 0, %s143
      %s145 = sphi 0, %s143
      %s146 = sphi 0, %s145
      %s160 = sphi 0, %s146
      %s164 = sphi 0, %s164
      %s166 = sphi 0, %s164
      %s167 = sphi 0, %s166
      %s181 = sphi 0, %s167
      %s185 = sphi 0, %s185
      %s187 = sphi 0, %s185
      %s188 = sphi 0, %s187
      %s202 = sphi 0, %s188
      %s206 = sphi 0, %s206
      %s208 = sphi 0, %s206
      %s209 = sphi 0, %s208
      %s223 = sphi 0, %s209
      %s227 = sphi 0, %s227
      %s229 = sphi 0, %s227
      %s230 = sphi 0, %s229
      %s244 = sphi 0, %s230
      %s248 = sphi 0, %s248
      %s250 = sphi 0, %s248
      %s251 = sphi 0, %s250
      %s265 = sphi 0, %s251
      %s271 = sphi 0, %s273
      %s274 = sphi 0, %s271
      %s275 = sphi 0, %s274
      %s291 = sphi 0, %s275
      %s297 = sphi 0, %s299
      %s300 = sphi 0, %s297
      %s301 = sphi 0, %s300
      %s317 = sphi 0, %s301
    $region4: #{tpu_custom_call.1} parent=1 // loop_header_branch
      %28 = sbr.rel (%p26) target = $region8
    $region5: #{tpu_custom_call.1} parent=1 // loop_body
      %s30 = ssub.s32 %s25, 1
      %s31 = ssub.s32 %s25, 2
      %s32 = sadd.s32 %s25, 1
      %s33 = ssub.s32 %s25, %s32
      %p34 = scmp.eq.s32.totalorder %s33, 0
      %s36 = sadd.s32 %s35, 1
      %s37 = scalar_select %p34, %s35, %s36
      %p40 = pneg %p34
      %p41 = scmp.eq.s32.totalorder %s25, 1
      %p42 = por %p40, %p41
      %p43 = scmp.ne.s32.totalorder %s35, %s38
      %p44 = scmp.eq.s32.totalorder %s25, 0
      %p45 = por %p43, %p44
      %p46 = scmp.ne.s32.totalorder %s35, %s38
      %p47 = scmp.eq.s32.totalorder %s30, 1
      %p48 = por %p46, %p47
      %p49 = scmp.ne.s32.totalorder %s38, %s39
      %p50 = scmp.eq.s32.totalorder %s30, 0
      %p51 = por %p49, %p50
      %p52 = scmp.ne.s32.totalorder %s38, %s39
      %p53 = scmp.eq.s32.totalorder %s31, 1
      %p54 = por %p52, %p53
      %p56 = scmp.ne.s32.totalorder %s39, %s55
      %p57 = scmp.eq.s32.totalorder %s31, 0
      %p58 = por %p56, %p57
      %s60 = sadd.s32 %s59, 1
      %p63 = scmp.eq.s32.totalorder %s25, 1
      %p64 = scmp.ne.s32.totalorder %s59, %s61
      %p65 = scmp.eq.s32.totalorder %s25, 0
      %p66 = por %p64, %p65
      %p67 = scmp.ne.s32.totalorder %s59, %s61
      %p68 = scmp.eq.s32.totalorder %s30, 1
      %p69 = por %p67, %p68
      %p70 = scmp.ne.s32.totalorder %s61, %s62
      %p71 = scmp.eq.s32.totalorder %s30, 0
      %p72 = por %p70, %p71
      %p73 = scmp.ne.s32.totalorder %s61, %s62
      %p74 = scmp.eq.s32.totalorder %s31, 1
      %p75 = por %p73, %p74
      %p77 = scmp.ne.s32.totalorder %s62, %s76
      %p78 = scmp.eq.s32.totalorder %s31, 0
      %p79 = por %p77, %p78
      %s81 = sadd.s32 %s80, 1
      %p84 = scmp.eq.s32.totalorder %s25, 1
      %p85 = scmp.ne.s32.totalorder %s80, %s82
      %p86 = scmp.eq.s32.totalorder %s25, 0
      %p87 = por %p85, %p86
      %p88 = scmp.ne.s32.totalorder %s80, %s82
      %p89 = scmp.eq.s32.totalorder %s30, 1
      %p90 = por %p88, %p89
      %p91 = scmp.ne.s32.totalorder %s82, %s83
      %p92 = scmp.eq.s32.totalorder %s30, 0
      %p93 = por %p91, %p92
      %p94 = scmp.ne.s32.totalorder %s82, %s83
      %p95 = scmp.eq.s32.totalorder %s31, 1
      %p96 = por %p94, %p95
      %p98 = scmp.ne.s32.totalorder %s83, %s97
      %p99 = scmp.eq.s32.totalorder %s31, 0
      %p100 = por %p98, %p99
      %s102 = sadd.s32 %s101, 1
      %p105 = scmp.eq.s32.totalorder %s25, 1
      %p106 = scmp.ne.s32.totalorder %s101, %s103
      %p107 = scmp.eq.s32.totalorder %s25, 0
      %p108 = por %p106, %p107
      %p109 = scmp.ne.s32.totalorder %s101, %s103
      %p110 = scmp.eq.s32.totalorder %s30, 1
      %p111 = por %p109, %p110
      %p112 = scmp.ne.s32.totalorder %s103, %s104
      %p113 = scmp.eq.s32.totalorder %s30, 0
      %p114 = por %p112, %p113
      %p115 = scmp.ne.s32.totalorder %s103, %s104
      %p116 = scmp.eq.s32.totalorder %s31, 1
      %p117 = por %p115, %p116
      %p119 = scmp.ne.s32.totalorder %s104, %s118
      %p120 = scmp.eq.s32.totalorder %s31, 0
      %p121 = por %p119, %p120
      %s123 = sadd.s32 %s122, 1
      %p126 = scmp.eq.s32.totalorder %s25, 1
      %p127 = scmp.ne.s32.totalorder %s122, %s124
      %p128 = scmp.eq.s32.totalorder %s25, 0
      %p129 = por %p127, %p128
      %p130 = scmp.ne.s32.totalorder %s122, %s124
      %p131 = scmp.eq.s32.totalorder %s30, 1
      %p132 = por %p130, %p131
      %p133 = scmp.ne.s32.totalorder %s124, %s125
      %p134 = scmp.eq.s32.totalorder %s30, 0
      %p135 = por %p133, %p134
      %p136 = scmp.ne.s32.totalorder %s124, %s125
      %p137 = scmp.eq.s32.totalorder %s31, 1
      %p138 = por %p136, %p137
      %p140 = scmp.ne.s32.totalorder %s125, %s139
      %p141 = scmp.eq.s32.totalorder %s31, 0
      %p142 = por %p140, %p141
      %s144 = sadd.s32 %s143, 1
      %p147 = scmp.eq.s32.totalorder %s25, 1
      %p148 = scmp.ne.s32.totalorder %s143, %s145
      %p149 = scmp.eq.s32.totalorder %s25, 0
      %p150 = por %p148, %p149
      %p151 = scmp.ne.s32.totalorder %s143, %s145
      %p152 = scmp.eq.s32.totalorder %s30, 1
      %p153 = por %p151, %p152
      %p154 = scmp.ne.s32.totalorder %s145, %s146
      %p155 = scmp.eq.s32.totalorder %s30, 0
      %p156 = por %p154, %p155
      %p157 = scmp.ne.s32.totalorder %s145, %s146
      %p158 = scmp.eq.s32.totalorder %s31, 1
      %p159 = por %p157, %p158
      %p161 = scmp.ne.s32.totalorder %s146, %s160
      %p162 = scmp.eq.s32.totalorder %s31, 0
      %p163 = por %p161, %p162
      %s165 = sadd.s32 %s164, 1
      %p168 = scmp.eq.s32.totalorder %s25, 1
      %p169 = scmp.ne.s32.totalorder %s164, %s166
      %p170 = scmp.eq.s32.totalorder %s25, 0
      %p171 = por %p169, %p170
      %p172 = scmp.ne.s32.totalorder %s164, %s166
      %p173 = scmp.eq.s32.totalorder %s30, 1
      %p174 = por %p172, %p173
      %p175 = scmp.ne.s32.totalorder %s166, %s167
      %p176 = scmp.eq.s32.totalorder %s30, 0
      %p177 = por %p175, %p176
      %p178 = scmp.ne.s32.totalorder %s166, %s167
      %p179 = scmp.eq.s32.totalorder %s31, 1
      %p180 = por %p178, %p179
      %p182 = scmp.ne.s32.totalorder %s167, %s181
      %p183 = scmp.eq.s32.totalorder %s31, 0
      %p184 = por %p182, %p183
      %s186 = sadd.s32 %s185, 1
      %p189 = scmp.eq.s32.totalorder %s25, 1
      %p190 = scmp.ne.s32.totalorder %s185, %s187
      %p191 = scmp.eq.s32.totalorder %s25, 0
      %p192 = por %p190, %p191
      %p193 = scmp.ne.s32.totalorder %s185, %s187
      %p194 = scmp.eq.s32.totalorder %s30, 1
      %p195 = por %p193, %p194
      %p196 = scmp.ne.s32.totalorder %s187, %s188
      %p197 = scmp.eq.s32.totalorder %s30, 0
      %p198 = por %p196, %p197
      %p199 = scmp.ne.s32.totalorder %s187, %s188
      %p200 = scmp.eq.s32.totalorder %s31, 1
      %p201 = por %p199, %p200
      %p203 = scmp.ne.s32.totalorder %s188, %s202
      %p204 = scmp.eq.s32.totalorder %s31, 0
      %p205 = por %p203, %p204
      %s207 = sadd.s32 %s206, 1
      %p210 = scmp.eq.s32.totalorder %s25, 1
      %p211 = scmp.ne.s32.totalorder %s206, %s208
      %p212 = scmp.eq.s32.totalorder %s25, 0
      %p213 = por %p211, %p212
      %p214 = scmp.ne.s32.totalorder %s206, %s208
      %p215 = scmp.eq.s32.totalorder %s30, 1
      %p216 = por %p214, %p215
      %p217 = scmp.ne.s32.totalorder %s208, %s209
      %p218 = scmp.eq.s32.totalorder %s30, 0
      %p219 = por %p217, %p218
      %p220 = scmp.ne.s32.totalorder %s208, %s209
      %p221 = scmp.eq.s32.totalorder %s31, 1
      %p222 = por %p220, %p221
      %p224 = scmp.ne.s32.totalorder %s209, %s223
      %p225 = scmp.eq.s32.totalorder %s31, 0
      %p226 = por %p224, %p225
      %s228 = sadd.s32 %s227, 1
      %p231 = scmp.eq.s32.totalorder %s25, 1
      %p232 = scmp.ne.s32.totalorder %s227, %s229
      %p233 = scmp.eq.s32.totalorder %s25, 0
      %p234 = por %p232, %p233
      %p235 = scmp.ne.s32.totalorder %s227, %s229
      %p236 = scmp.eq.s32.totalorder %s30, 1
      %p237 = por %p235, %p236
      %p238 = scmp.ne.s32.totalorder %s229, %s230
      %p239 = scmp.eq.s32.totalorder %s30, 0
      %p240 = por %p238, %p239
      %p241 = scmp.ne.s32.totalorder %s229, %s230
      %p242 = scmp.eq.s32.totalorder %s31, 1
      %p243 = por %p241, %p242
      %p245 = scmp.ne.s32.totalorder %s230, %s244
      %p246 = scmp.eq.s32.totalorder %s31, 0
      %p247 = por %p245, %p246
      %s249 = sadd.s32 %s248, 1
      %p252 = scmp.eq.s32.totalorder %s25, 1
      %p253 = scmp.ne.s32.totalorder %s248, %s250
      %p254 = scmp.eq.s32.totalorder %s25, 0
      %p255 = por %p253, %p254
      %p256 = scmp.ne.s32.totalorder %s248, %s250
      %p257 = scmp.eq.s32.totalorder %s30, 1
      %p258 = por %p256, %p257
      %p259 = scmp.ne.s32.totalorder %s250, %s251
      %p260 = scmp.eq.s32.totalorder %s30, 0
      %p261 = por %p259, %p260
      %p262 = scmp.ne.s32.totalorder %s250, %s251
      %p263 = scmp.eq.s32.totalorder %s31, 1
      %p264 = por %p262, %p263
      %p266 = scmp.ne.s32.totalorder %s251, %s265
      %p267 = scmp.eq.s32.totalorder %s31, 0
      %p268 = por %p266, %p267
      %s269 = ssub.s32 %s25, %s32
      %p270 = scmp.eq.s32.totalorder %s269, 0
      %s272 = sadd.s32 %s271, 1
      %s273 = scalar_select %p270, %s271, %s272
      %p276 = pneg %p270
      %p277 = scmp.eq.s32.totalorder %s25, 1
      %p278 = por %p276, %p277
      %p279 = scmp.ne.s32.totalorder %s271, %s274
      %p280 = scmp.eq.s32.totalorder %s25, 0
      %p281 = por %p279, %p280
      %p282 = scmp.ne.s32.totalorder %s271, %s274
      %p283 = scmp.eq.s32.totalorder %s30, 1
      %p284 = por %p282, %p283
      %p285 = scmp.ne.s32.totalorder %s274, %s275
      %p286 = scmp.eq.s32.totalorder %s30, 0
      %p287 = por %p285, %p286
      %p288 = scmp.ne.s32.totalorder %s274, %s275
      %p289 = scmp.eq.s32.totalorder %s31, 1
      %p290 = por %p288, %p289
      %p292 = scmp.ne.s32.totalorder %s275, %s291
      %p293 = scmp.eq.s32.totalorder %s31, 0
      %p294 = por %p292, %p293
      %s295 = ssub.s32 %s25, %s32
      %p296 = scmp.eq.s32.totalorder %s295, 0
      %s298 = sadd.s32 %s297, 1
      %s299 = scalar_select %p296, %s297, %s298
      %p302 = pneg %p296
      %p303 = scmp.eq.s32.totalorder %s25, 1
      %p304 = por %p302, %p303
      %p305 = scmp.ne.s32.totalorder %s297, %s300
      %p306 = scmp.eq.s32.totalorder %s25, 0
      %p307 = por %p305, %p306
      %p308 = scmp.ne.s32.totalorder %s297, %s300
      %p309 = scmp.eq.s32.totalorder %s30, 1
      %p310 = por %p308, %p309
      %p311 = scmp.ne.s32.totalorder %s300, %s301
      %p312 = scmp.eq.s32.totalorder %s30, 0
      %p313 = por %p311, %p312
      %p314 = scmp.ne.s32.totalorder %s300, %s301
      %p315 = scmp.eq.s32.totalorder %s31, 1
      %p316 = por %p314, %p315
      %p318 = scmp.ne.s32.totalorder %s301, %s317
      %p319 = scmp.eq.s32.totalorder %s31, 0
      %p320 = por %p318, %p319
      %p321 = scmp.le.s32.totalorder 1, %s25
      %p322 = scmp.lt.s32.totalorder %s25, 3
      %p323 = pnand %p321, %p322
      %p324 = pneg %p323
      // Predicated region
      $region9: #{tpu_custom_call.1} parent=5 // pred_check
        _
      $region10: #{tpu_custom_call.1} parent=5 // pred_check_branch
        %326 = sbr.rel (%p323) target = $region12
      $region11: #{tpu_custom_call.1} parent=5 // pred_region
        %s327 = ssub.s32 %s25, 1
        // Predicated region
        $region13: #{tpu_custom_call.1} parent=11 // pred_check
          %p328 = pneg %p72
        $region14: #{tpu_custom_call.1} parent=11 // pred_check_branch
          %330 = sbr.rel (%p328) target = $region16
        $region15: #{tpu_custom_call.1} parent=11 // pred_region
          _
        $region16: #{tpu_custom_call.1} parent=11 // pred_fallthru
          _
        // Predicated region
        $region17: #{tpu_custom_call.1} parent=11 // pred_check
          %p331 = pneg %p93
        $region18: #{tpu_custom_call.1} parent=11 // pred_check_branch
          %333 = sbr.rel (%p331) target = $region20
        $region19: #{tpu_custom_call.1} parent=11 // pred_region
          _
        $region20: #{tpu_custom_call.1} parent=11 // pred_fallthru
          _
        // Predicated region
        $region21: #{tpu_custom_call.1} parent=11 // pred_check
          %p334 = pneg %p114
        $region22: #{tpu_custom_call.1} parent=11 // pred_check_branch
          %336 = sbr.rel (%p334) target = $region24
        $region23: #{tpu_custom_call.1} parent=11 // pred_region
          _
        $region24: #{tpu_custom_call.1} parent=11 // pred_fallthru
          _
        // Predicated region
        $region25: #{tpu_custom_call.1} parent=11 // pred_check
          %p337 = pneg %p135
        $region26: #{tpu_custom_call.1} parent=11 // pred_check_branch
          %339 = sbr.rel (%p337) target = $region28
        $region27: #{tpu_custom_call.1} parent=11 // pred_region
          _
        $region28: #{tpu_custom_call.1} parent=11 // pred_fallthru
          _
        // Predicated region
        $region29: #{tpu_custom_call.1} parent=11 // pred_check
          %p340 = pneg %p156
        $region30: #{tpu_custom_call.1} parent=11 // pred_check_branch
          %342 = sbr.rel (%p340) target = $region32
        $region31: #{tpu_custom_call.1} parent=11 // pred_region
          _
        $region32: #{tpu_custom_call.1} parent=11 // pred_fallthru
          _
        // Predicated region
        $region33: #{tpu_custom_call.1} parent=11 // pred_check
          %p343 = pneg %p177
        $region34: #{tpu_custom_call.1} parent=11 // pred_check_branch
          %345 = sbr.rel (%p343) target = $region36
        $region35: #{tpu_custom_call.1} parent=11 // pred_region
          _
        $region36: #{tpu_custom_call.1} parent=11 // pred_fallthru
          _
        // Predicated region
        $region37: #{tpu_custom_call.1} parent=11 // pred_check
          %p346 = pneg %p198
        $region38: #{tpu_custom_call.1} parent=11 // pred_check_branch
          %348 = sbr.rel (%p346) target = $region40
        $region39: #{tpu_custom_call.1} parent=11 // pred_region
          _
        $region40: #{tpu_custom_call.1} parent=11 // pred_fallthru
          _
        // Predicated region
        $region41: #{tpu_custom_call.1} parent=11 // pred_check
          %p349 = pneg %p219
        $region42: #{tpu_custom_call.1} parent=11 // pred_check_branch
          %351 = sbr.rel (%p349) target = $region44
        $region43: #{tpu_custom_call.1} parent=11 // pred_region
          _
        $region44: #{tpu_custom_call.1} parent=11 // pred_fallthru
          _
        // Predicated region
        $region45: #{tpu_custom_call.1} parent=11 // pred_check
          %p352 = pneg %p240
        $region46: #{tpu_custom_call.1} parent=11 // pred_check_branch
          %354 = sbr.rel (%p352) target = $region48
        $region47: #{tpu_custom_call.1} parent=11 // pred_region
          _
        $region48: #{tpu_custom_call.1} parent=11 // pred_fallthru
          _
        // Predicated region
        $region49: #{tpu_custom_call.1} parent=11 // pred_check
          %p355 = pneg %p261
        $region50: #{tpu_custom_call.1} parent=11 // pred_check_branch
          %357 = sbr.rel (%p355) target = $region52
        $region51: #{tpu_custom_call.1} parent=11 // pred_region
          _
        $region52: #{tpu_custom_call.1} parent=11 // pred_fallthru
          _
      $region12: #{tpu_custom_call.1} parent=5 // pred_fallthru
        _
      %p358 = scmp.lt.s32.totalorder %s25, 2
      // Predicated region
      $region53: #{tpu_custom_call.1} parent=5 // pred_check
        %p359 = pneg %p358
      $region54: #{tpu_custom_call.1} parent=5 // pred_check_branch
        %361 = sbr.rel (%p359) target = $region56
      $region55: #{tpu_custom_call.1} parent=5 // pred_region
        // Predicated region
        $region57: #{tpu_custom_call.1} parent=55 // pred_check
          %p362 = pneg %p45
        $region58: #{tpu_custom_call.1} parent=55 // pred_check_branch
          %364 = sbr.rel (%p362) target = $region60
        $region59: #{tpu_custom_call.1} parent=55 // pred_region
          %p365 = scmp.lt.s32.totalorder %s25, 1
          %s366 = scalar_select %p365, %s25, 1
          %s367 = smul.addr %s366, 4
          %s368 = scalar_lea.vmem %s0, %s367
        $region60: #{tpu_custom_call.1} parent=55 // pred_fallthru
          _
      $region56: #{tpu_custom_call.1} parent=5 // pred_fallthru
        _
      %p369 = scmp.le.s32.totalorder 1, %s25
      %p370 = scmp.lt.s32.totalorder %s25, 3
      %p371 = pnand %p369, %p370
      %p372 = pneg %p371
      // Predicated region
      $region61: #{tpu_custom_call.1} parent=5 // pred_check
        _
      $region62: #{tpu_custom_call.1} parent=5 // pred_check_branch
        %374 = sbr.rel (%p371) target = $region64
      $region63: #{tpu_custom_call.1} parent=5 // pred_region
        %s375 = ssub.s32 %s25, 1
        %p376 = scmp.lt.s32.totalorder %s30, 1
        %s377 = scalar_select %p376, %s30, 1
        %s378 = smul.addr %s377, 4
        %s379 = scalar_lea.vmem %s0, %s378
        %p380 = pneg %p51
        %p381 = pneg %p48
        %p382 = pneg %p72
        %p383 = pneg %p69
        %p384 = pneg %p93
        %p385 = pneg %p90
        %p386 = pneg %p114
        %p387 = pneg %p111
        %p388 = pneg %p135
        %p389 = pneg %p132
        %p390 = pneg %p156
        %p391 = pneg %p153
        %p392 = pneg %p177
        %p393 = pneg %p174
        %p394 = pneg %p198
        %p395 = pneg %p195
        %p396 = pneg %p219
        %p397 = pneg %p216
        %p398 = pneg %p240
        %p399 = pneg %p237
        %p400 = pneg %p261
        %p401 = pneg %p258
        %p402 = pneg %p287
        %p403 = pneg %p284
        %s404 = sand.u32 %s274, 1
        %s405 = scalar_lea.sflag [#allocation3], %s404
        %s406 = sand.u32 %s274, 1
        %s407 = smul.addr %s406, 4
        %s408 = scalar_lea.vmem [#allocation2], %s407
        %p409 = pneg %p313
        %p410 = pneg %p310
        %s411 = sand.u32 %s300, 1
        %s412 = scalar_lea.sflag [#allocation5], %s411
        %s413 = sand.u32 %s300, 1
        %s414 = smul.addr %s413, 32
        %s415 = scalar_lea.vmem [#allocation4], %s414
        %p416 = scmp.lt.s32.totalorder %s30, 1
        %s417 = scalar_select %p416, %s30, 1
        %s418 = smul.addr %s417, 4
        %s419 = scalar_lea.vmem %s0, %s418
        %v420 = vld [vmem:[%s419] sm:$0xf]
        %v421 = vld [vmem:[%s1] sm:$0xff]
        %v422 = vld [vmem:[%s1 + $0x8] sm:$0xff]
        %v423 = vld [vmem:[%s1 + $0x10] sm:$0xff]
        %v424 = vld [vmem:[%s1 + $0x18] sm:$0xff]
        %v425 = vld [vmem:[%s1 + $0x20] sm:$0xff]
        %v426 = vld [vmem:[%s1 + $0x28] sm:$0xff]
        %vm427 = vcmask 392192
        %v429 = vsel %vm427, %v420, 0
        %431 = vmatprep.subr.mxu0 0.0
        %432 = vmatpush1.msra.mxu0 0.0
        %433 = vmatprep.subr.mxu0 0.0
        %434 = vmatpush1.msra.mxu0 0.0
        %435 = vmatprep.subr.mxu0 0.0
        %436 = vmatpush1.msra.mxu0 0.0
        %437 = vmatprep.subr.mxu0 0.0
        %438 = vmatpush1.msra.mxu0 0.0
        %439 = vmatprep.subr.mxu0 0.0
        %440 = vmatpush1.msra.mxu0 0.0
        %441 = vmatprep.subr.mxu0 0.0
        %442 = vmatpush1.msra.mxu0 0.0
        %443 = vmatprep.subr.mxu0 0.0
        %444 = vmatpush1.msra.mxu0 0.0
        %445 = vmatprep.subr.mxu0 0.0
        %446 = vmatpush1.msra.mxu0 0.0
        %447 = vmatprep.subr.mxu0 0.0
        %448 = vmatpush1.msra.mxu0 0.0
        %449 = vmatprep.subr.mxu0 0.0
        %450 = vmatpush1.msra.mxu0 0.0
        %451 = vmatprep.subr.mxu0 0.0
        %452 = vmatpush1.msra.mxu0 %v426
        %453 = vmatprep.subr.mxu0 0.0
        %454 = vmatpush1.msra.mxu0 %v425
        %455 = vmatprep.subr.mxu0 0.0
        %456 = vmatpush1.msra.mxu0 %v424
        %457 = vmatprep.subr.mxu0 0.0
        %458 = vmatpush1.msra.mxu0 %v423
        %459 = vmatprep.subr.mxu0 0.0
        %460 = vmatpush1.msra.mxu0 %v422
        %461 = vmatprep.subr.mxu0 0.0
        %462 = vmatpush1.msra.mxu0 %v421
        %463 = vmatprep.subr.mxu0 0.0
        %464 = vmatpush2.msra.mxu0 0.0
        %465 = vmatprep.subr.mxu0 0.0
        %466 = vmatpush2.msra.mxu0 0.0
        %467 = vmatprep.subr.mxu0 0.0
        %468 = vmatpush2.msra.mxu0 0.0
        %469 = vmatprep.subr.mxu0 0.0
        %470 = vmatpush2.msra.mxu0 0.0
        %471 = vmatprep.subr.mxu0 0.0
        %472 = vmatpush2.msra.mxu0 0.0
        %473 = vmatprep.subr.mxu0 0.0
        %474 = vmatpush2.msra.mxu0 0.0
        %475 = vmatprep.subr.mxu0 0.0
        %476 = vmatpush2.msra.mxu0 0.0
        %477 = vmatprep.subr.mxu0 0.0
        %478 = vmatpush2.msra.mxu0 0.0
        %479 = vmatprep.subr.mxu0 0.0
        %480 = vmatpush2.msra.mxu0 0.0
        %481 = vmatprep.subr.mxu0 0.0
        %482 = vmatpush2.msra.mxu0 0.0
        %483 = vmatprep.subr.mxu0 0.0
        %484 = vmatpush2.msra.mxu0 0.0
        %485 = vmatprep.subr.mxu0 0.0
        %486 = vmatpush2.msra.mxu0 0.0
        %487 = vmatprep.subr.mxu0 0.0
        %488 = vmatpush2.msra.mxu0 0.0
        %489 = vmatprep.subr.mxu0 0.0
        %490 = vmatpush2.msra.mxu0 0.0
        %491 = vmatprep.subr.mxu0 0.0
        %492 = vmatpush2.msra.mxu0 0.0
        %493 = vmatprep.subr.mxu0 0.0
        %494 = vmatpush2.msra.mxu0 0.0
        %495 = vmatprep.mubr.f32.mxu0 0.0
        %496 = vmatmul.mubr.f32.gmra.mxu0 %v429
        %v497 = vpop.f32.mrf.mxu0
        %v498 = vadd.f32 0.0, %v497
        %v499 = vpop.f32.mrf.mxu0
        %500 = vdwg.mxu0
        %vm501 = vcmask 31744
        %v503 = vsel %vm501, 1.0, 0
        %vm505 = vcmask 1043456
        %v507 = vsel %vm505, %v498, 0
        %509 = vmatprep.subr.mxu0 0.0
        %510 = vmatpush1.msra.mxu0 0.0
        %511 = vmatprep.subr.mxu0 0.0
        %512 = vmatpush1.msra.mxu0 0.0
        %513 = vmatprep.subr.mxu0 0.0
        %514 = vmatpush1.msra.mxu0 0.0
        %515 = vmatprep.subr.mxu0 0.0
        %516 = vmatpush1.msra.mxu0 0.0
        %517 = vmatprep.subr.mxu0 0.0
        %518 = vmatpush1.msra.mxu0 0.0
        %519 = vmatprep.subr.mxu0 0.0
        %520 = vmatpush1.msra.mxu0 0.0
        %521 = vmatprep.subr.mxu0 0.0
        %522 = vmatpush1.msra.mxu0 0.0
        %523 = vmatprep.subr.mxu0 0.0
        %524 = vmatpush1.msra.mxu0 0.0
        %525 = vmatprep.subr.mxu0 0.0
        %526 = vmatpush1.msra.mxu0 0.0
        %527 = vmatprep.subr.mxu0 0.0
        %528 = vmatpush1.msra.mxu0 0.0
        %529 = vmatprep.subr.mxu0 0.0
        %530 = vmatpush1.msra.mxu0 0.0
        %531 = vmatprep.subr.mxu0 0.0
        %532 = vmatpush1.msra.mxu0 0.0
        %533 = vmatprep.subr.mxu0 0.0
        %534 = vmatpush1.msra.mxu0 0.0
        %535 = vmatprep.subr.mxu0 0.0
        %536 = vmatpush1.msra.mxu0 0.0
        %537 = vmatprep.subr.mxu0 0.0
        %538 = vmatpush1.msra.mxu0 0.0
        %539 = vmatprep.subr.mxu0 0.0
        %540 = vmatpush1.msra.mxu0 %v507
        %541 = vmatprep.subr.mxu0 0.0
        %542 = vmatpush2.msra.mxu0 0.0
        %543 = vmatprep.subr.mxu0 0.0
        %544 = vmatpush2.msra.mxu0 0.0
        %545 = vmatprep.subr.mxu0 0.0
        %546 = vmatpush2.msra.mxu0 0.0
        %547 = vmatprep.subr.mxu0 0.0
        %548 = vmatpush2.msra.mxu0 0.0
        %549 = vmatprep.subr.mxu0 0.0
        %550 = vmatpush2.msra.mxu0 0.0
        %551 = vmatprep.subr.mxu0 0.0
        %552 = vmatpush2.msra.mxu0 0.0
        %553 = vmatprep.subr.mxu0 0.0
        %554 = vmatpush2.msra.mxu0 0.0
        %555 = vmatprep.subr.mxu0 0.0
        %556 = vmatpush2.msra.mxu0 0.0
        %557 = vmatprep.subr.mxu0 0.0
        %558 = vmatpush2.msra.mxu0 0.0
        %559 = vmatprep.subr.mxu0 0.0
        %560 = vmatpush2.msra.mxu0 0.0
        %561 = vmatprep.subr.mxu0 0.0
        %562 = vmatpush2.msra.mxu0 0.0
        %563 = vmatprep.subr.mxu0 0.0
        %564 = vmatpush2.msra.mxu0 0.0
        %565 = vmatprep.subr.mxu0 0.0
        %566 = vmatpush2.msra.mxu0 0.0
        %567 = vmatprep.subr.mxu0 0.0
        %568 = vmatpush2.msra.mxu0 0.0
        %569 = vmatprep.subr.mxu0 0.0
        %570 = vmatpush2.msra.mxu0 0.0
        %571 = vmatprep.subr.mxu0 0.0
        %572 = vmatpush2.msra.mxu0 0.0
        %573 = vmatprep.mubr.f32.mxu0 0.0
        %574 = vmatmul.mubr.f32.gmra.mxu0 %v503
        %v575 = vpop.f32.mrf.mxu0
        %v576 = vadd.f32 0.0, %v575
        %v577 = vpop.f32.mrf.mxu0
        %578 = vdwg.mxu0
        %v579 = vmul.f32 %v576, 0.25
        %v580 = vld [vmem:[%s2] sm:$0xff]
        %v581 = vld [vmem:[%s2 + $0x8] sm:$0xff]
        %v582 = vld [vmem:[%s2 + $0x10] sm:$0xff]
        %v583 = vld [vmem:[%s2 + $0x18] sm:$0xff]
        %v584 = vld [vmem:[%s2 + $0x20] sm:$0xff]
        %v585 = vld [vmem:[%s2 + $0x28] sm:$0xff]
        %v586 = vld [vmem:[%s2 + $0x30] sm:$0xff]
        %v587 = vld [vmem:[%s2 + $0x38] sm:$0xff]
        %v588 = vld [vmem:[%s3] sm:$0x1]
        %vm589 = vcmask 523264
        %v591 = vsel %vm589, %v579, 0
        %593 = vmatprep.subr.mxu0 0.0
        %594 = vmatpush1.msra.mxu0 0.0
        %595 = vmatprep.subr.mxu0 0.0
        %596 = vmatpush1.msra.mxu0 0.0
        %597 = vmatprep.subr.mxu0 0.0
        %598 = vmatpush1.msra.mxu0 0.0
        %599 = vmatprep.subr.mxu0 0.0
        %600 = vmatpush1.msra.mxu0 0.0
        %601 = vmatprep.subr.mxu0 0.0
        %602 = vmatpush1.msra.mxu0 0.0
        %603 = vmatprep.subr.mxu0 0.0
        %604 = vmatpush1.msra.mxu0 0.0
        %605 = vmatprep.subr.mxu0 0.0
        %606 = vmatpush1.msra.mxu0 0.0
        %607 = vmatprep.subr.mxu0 0.0
        %608 = vmatpush1.msra.mxu0 0.0
        %609 = vmatprep.subr.mxu0 0.0
        %610 = vmatpush1.msra.mxu0 %v587
        %611 = vmatprep.subr.mxu0 0.0
        %612 = vmatpush1.msra.mxu0 %v586
        %613 = vmatprep.subr.mxu0 0.0
        %614 = vmatpush1.msra.mxu0 %v585
        %615 = vmatprep.subr.mxu0 0.0
        %616 = vmatpush1.msra.mxu0 %v584
        %617 = vmatprep.subr.mxu0 0.0
        %618 = vmatpush1.msra.mxu0 %v583
        %619 = vmatprep.subr.mxu0 0.0
        %620 = vmatpush1.msra.mxu0 %v582
        %621 = vmatprep.subr.mxu0 0.0
        %622 = vmatpush1.msra.mxu0 %v581
        %623 = vmatprep.subr.mxu0 0.0
        %624 = vmatpush1.msra.mxu0 %v580
        %625 = vmatprep.subr.mxu0 0.0
        %626 = vmatpush2.msra.mxu0 0.0
        %627 = vmatprep.subr.mxu0 0.0
        %628 = vmatpush2.msra.mxu0 0.0
        %629 = vmatprep.subr.mxu0 0.0
        %630 = vmatpush2.msra.mxu0 0.0
        %631 = vmatprep.subr.mxu0 0.0
        %632 = vmatpush2.msra.mxu0 0.0
        %633 = vmatprep.subr.mxu0 0.0
        %634 = vmatpush2.msra.mxu0 0.0
        %635 = vmatprep.subr.mxu0 0.0
        %636 = vmatpush2.msra.mxu0 0.0
        %637 = vmatprep.subr.mxu0 0.0
        %638 = vmatpush2.msra.mxu0 0.0
        %639 = vmatprep.subr.mxu0 0.0
        %640 = vmatpush2.msra.mxu0 0.0
        %641 = vmatprep.subr.mxu0 0.0
        %642 = vmatpush2.msra.mxu0 0.0
        %643 = vmatprep.subr.mxu0 0.0
        %644 = vmatpush2.msra.mxu0 0.0
        %645 = vmatprep.subr.mxu0 0.0
        %646 = vmatpush2.msra.mxu0 0.0
        %647 = vmatprep.subr.mxu0 0.0
        %648 = vmatpush2.msra.mxu0 0.0
        %649 = vmatprep.subr.mxu0 0.0
        %650 = vmatpush2.msra.mxu0 0.0
        %651 = vmatprep.subr.mxu0 0.0
        %652 = vmatpush2.msra.mxu0 0.0
        %653 = vmatprep.subr.mxu0 0.0
        %654 = vmatpush2.msra.mxu0 0.0
        %655 = vmatprep.subr.mxu0 0.0
        %656 = vmatpush2.msra.mxu0 0.0
        %657 = vmatprep.mubr.f32.mxu0 0.0
        %658 = vmatmul.mubr.f32.gmra.mxu0 %v591
        %v659 = vpop.f32.mrf.mxu0
        %v660 = vadd.f32 %v588, %v659
        %v661 = vpop.f32.mrf.mxu0
        %662 = vdwg.mxu0
        %v663 = vmax.f32 %v660, 0.0
        %v664 = vld [vmem:[%s4] sm:$0xff]
        %v665 = vld [vmem:[%s4 + $0x8] sm:$0xff]
        %v666 = vld [vmem:[%s5] sm:$0x1]
        %vm667 = vcmask 130048
        %v669 = vsel %vm667, %v663, 0
        %671 = vmatprep.subr.mxu0 0.0
        %672 = vmatpush1.msra.mxu0 0.0
        %673 = vmatprep.subr.mxu0 0.0
        %674 = vmatpush1.msra.mxu0 0.0
        %675 = vmatprep.subr.mxu0 0.0
        %676 = vmatpush1.msra.mxu0 0.0
        %677 = vmatprep.subr.mxu0 0.0
        %678 = vmatpush1.msra.mxu0 0.0
        %679 = vmatprep.subr.mxu0 0.0
        %680 = vmatpush1.msra.mxu0 0.0
        %681 = vmatprep.subr.mxu0 0.0
        %682 = vmatpush1.msra.mxu0 0.0
        %683 = vmatprep.subr.mxu0 0.0
        %684 = vmatpush1.msra.mxu0 0.0
        %685 = vmatprep.subr.mxu0 0.0
        %686 = vmatpush1.msra.mxu0 0.0
        %687 = vmatprep.subr.mxu0 0.0
        %688 = vmatpush1.msra.mxu0 0.0
        %689 = vmatprep.subr.mxu0 0.0
        %690 = vmatpush1.msra.mxu0 0.0
        %691 = vmatprep.subr.mxu0 0.0
        %692 = vmatpush1.msra.mxu0 0.0
        %693 = vmatprep.subr.mxu0 0.0
        %694 = vmatpush1.msra.mxu0 0.0
        %695 = vmatprep.subr.mxu0 0.0
        %696 = vmatpush1.msra.mxu0 0.0
        %697 = vmatprep.subr.mxu0 0.0
        %698 = vmatpush1.msra.mxu0 0.0
        %699 = vmatprep.subr.mxu0 0.0
        %700 = vmatpush1.msra.mxu0 %v665
        %701 = vmatprep.subr.mxu0 0.0
        %702 = vmatpush1.msra.mxu0 %v664
        %703 = vmatprep.subr.mxu0 0.0
        %704 = vmatpush2.msra.mxu0 0.0
        %705 = vmatprep.subr.mxu0 0.0
        %706 = vmatpush2.msra.mxu0 0.0
        %707 = vmatprep.subr.mxu0 0.0
        %708 = vmatpush2.msra.mxu0 0.0
        %709 = vmatprep.subr.mxu0 0.0
        %710 = vmatpush2.msra.mxu0 0.0
        %711 = vmatprep.subr.mxu0 0.0
        %712 = vmatpush2.msra.mxu0 0.0
        %713 = vmatprep.subr.mxu0 0.0
        %714 = vmatpush2.msra.mxu0 0.0
        %715 = vmatprep.subr.mxu0 0.0
        %716 = vmatpush2.msra.mxu0 0.0
        %717 = vmatprep.subr.mxu0 0.0
        %718 = vmatpush2.msra.mxu0 0.0
        %719 = vmatprep.subr.mxu0 0.0
        %720 = vmatpush2.msra.mxu0 0.0
        %721 = vmatprep.subr.mxu0 0.0
        %722 = vmatpush2.msra.mxu0 0.0
        %723 = vmatprep.subr.mxu0 0.0
        %724 = vmatpush2.msra.mxu0 0.0
        %725 = vmatprep.subr.mxu0 0.0
        %726 = vmatpush2.msra.mxu0 0.0
        %727 = vmatprep.subr.mxu0 0.0
        %728 = vmatpush2.msra.mxu0 0.0
        %729 = vmatprep.subr.mxu0 0.0
        %730 = vmatpush2.msra.mxu0 0.0
        %731 = vmatprep.subr.mxu0 0.0
        %732 = vmatpush2.msra.mxu0 0.0
        %733 = vmatprep.subr.mxu0 0.0
        %734 = vmatpush2.msra.mxu0 0.0
        %735 = vmatprep.mubr.f32.mxu0 0.0
        %736 = vmatmul.mubr.f32.gmra.mxu0 %v669
        %v737 = vpop.f32.mrf.mxu0
        %v738 = vadd.f32 %v666, %v737
        %v739 = vpop.f32.mrf.mxu0
        %740 = vdwg.mxu0
        %v741 = vmul.f32 %v738, 1.2
        %v742 = vadd.f32 %v741, 3.0
        %v743 = vmax.f32 %v742, 0.0
        %v744 = vmin.f32 %v743, 6.0
        %v745 = vmul.f32 %v744, 0.16666667
        %v746 = vadd.f32 %v745, 1.0
        %v747 = vlaneseq
        %v748 = vshrl.u32 %v747, 7
        %v749 = vsub.s32 0, %v748
        %v750 = vrot.slane %v746, %v749
        %v751 = vmul.f32 %v498, %v750
        %vm752 = vcmask 519168
        %753 = vst.msk [vmem:[%s408] sm:$0xf] %vm752, %v751
        %v756 = vunpack.c.l.s4 1983009808
        %v757 = vunpack.c.0.s8 %v756
        %v758 = vlaneseq
        %v759 = vshrl.u32 %v758, 7
        %v760 = vsub.s32 %v757, %v759
        %v761 = vrot.slane %v751, %v760
        %v762 = vcombine.high %v761, %v761
        %v764 = vunpack.c.l.s4 1983009808
        %v765 = vunpack.c.0.s8 %v764
        %v766 = vlaneseq
        %v767 = vshrl.u32 %v766, 7
        %v768 = vsub.s32 %v765, %v767
        %v769 = vrot.slane %v761, %v768
        %v771 = vunpack.c.l.s4 1983009808
        %v772 = vunpack.c.0.s8 %v771
        %v773 = vlaneseq
        %v774 = vshrl.u32 %v773, 7
        %v775 = vsub.s32 %v772, %v774
        %v776 = vrot.slane %v762, %v775
        %v777 = vrot.slane %v769, 7
        %v778 = vrot.slane %v776, 7
        %vm781 = vcmask 1040384
        %v782 = vsel %vm781, 0.0, %v777
        %v783 = vsel %vm781, 0.0, %v778
        %vm784 = vcmask 1042432
        %v785 = vsel %vm784, %v782, 0.0
        %v786 = vsel %vm784, %v783, 0.0
        %v790 = vunpack.c.l.s4 1983009808
        %v791 = vunpack.c.0.s8 %v790
        %v792 = vlaneseq
        %v793 = vshrl.u32 %v792, 7
        %v794 = vsub.s32 %v791, %v793
        %v795 = vrot.slane 0.0, %v794
        %v796 = vcombine.high %v795, %v795
        %v798 = vunpack.c.l.s4 1983009808
        %v799 = vunpack.c.0.s8 %v798
        %v800 = vlaneseq
        %v801 = vshrl.u32 %v800, 7
        %v802 = vsub.s32 %v799, %v801
        %v803 = vrot.slane %v785, %v802
        %v804 = vcombine.high %v803, %v803
        %vm805 = vcmask 1042434
        %vm806 = vmor %vm781, %vm805
        %vm807 = vcmask 1044484
        %vm808 = vmor %vm806, %vm807
        %vm809 = vcmask 1046534
        %vm810 = vmor %vm808, %vm809
        %v811 = vrot.slane %v795, 7
        %v812 = vrot.slane %v811, 2
        %v813 = vrot.slane %v796, 7
        %v814 = vsel %vm810, %v812, %v813
        %v815 = vrot.slane %v803, 7
        %v816 = vrot.slane %v815, 2
        %v817 = vrot.slane %v804, 7
        %v818 = vsel %vm810, %v816, %v817
        %v821 = vunpack.c.l.s4 1983009808
        %v822 = vunpack.c.0.s8 %v821
        %v823 = vlaneseq
        %v824 = vshrl.u32 %v823, 7
        %v825 = vsub.s32 %v822, %v824
        %v826 = vrot.slane %v786, %v825
        %v827 = vcombine.high %v826, %v826
        %v828 = vrot.slane %v826, 7
        %v829 = vrot.slane %v828, 2
        %v830 = vrot.slane %v827, 7
        %v831 = vsel %vm810, %v829, %v830
        %v832 = vcombine.low 0.0, %v785
        %v834 = vunpack.c.l.s4 1983009808
        %v835 = vunpack.c.0.s8 %v834
        %v836 = vlaneseq
        %v837 = vshrl.u32 %v836, 7
        %v838 = vsub.s32 %v835, %v837
        %v839 = vrot.slane %v832, %v838
        %v841 = vcombine.low %v814, %v818
        %v843 = vunpack.c.l.s4 1983009808
        %v844 = vunpack.c.0.s8 %v843
        %v845 = vlaneseq
        %v846 = vshrl.u32 %v845, 7
        %v847 = vsub.s32 %v844, %v846
        %v848 = vrot.slane %v841, %v847
        %849 = vrot.lane.b32.xlu0 %v848, 64
        %v850 = vpop.permute.xlu0 %849
        %v852 = vcombine.low %v796, %v804
        %v854 = vunpack.c.l.s4 1983009808
        %v855 = vunpack.c.0.s8 %v854
        %v856 = vlaneseq
        %v857 = vshrl.u32 %v856, 7
        %v858 = vsub.s32 %v855, %v857
        %v859 = vrot.slane %v852, %v858
        %v861 = vcombine.low %v785, %v786
        %v863 = vunpack.c.l.s4 1983009808
        %v864 = vunpack.c.0.s8 %v863
        %v865 = vlaneseq
        %v866 = vshrl.u32 %v865, 7
        %v867 = vsub.s32 %v864, %v866
        %v868 = vrot.slane %v861, %v867
        %869 = vrot.lane.b32.xlu0 %v868, 64
        %v870 = vpop.permute.xlu0 %869
        %v872 = vcombine.low %v818, %v831
        %v874 = vunpack.c.l.s4 1983009808
        %v875 = vunpack.c.0.s8 %v874
        %v876 = vlaneseq
        %v877 = vshrl.u32 %v876, 7
        %v878 = vsub.s32 %v875, %v877
        %v879 = vrot.slane %v872, %v878
        %v881 = vcombine.low %v804, %v827
        %v883 = vunpack.c.l.s4 1983009808
        %v884 = vunpack.c.0.s8 %v883
        %v885 = vlaneseq
        %v886 = vshrl.u32 %v885, 7
        %v887 = vsub.s32 %v884, %v886
        %v888 = vrot.slane %v881, %v887
        %889 = vrot.lane.b32.xlu0 %v888, 64
        %v890 = vpop.permute.xlu0 %889
        %v892 = vcombine.low %v786, 0.0
        %v894 = vunpack.c.l.s4 1983009808
        %v895 = vunpack.c.0.s8 %v894
        %v896 = vlaneseq
        %v897 = vshrl.u32 %v896, 7
        %v898 = vsub.s32 %v895, %v897
        %v899 = vrot.slane %v892, %v898
        %v901 = vcombine.low %v831, %v814
        %v903 = vunpack.c.l.s4 1983009808
        %v904 = vunpack.c.0.s8 %v903
        %v905 = vlaneseq
        %v906 = vshrl.u32 %v905, 7
        %v907 = vsub.s32 %v904, %v906
        %v908 = vrot.slane %v901, %v907
        %909 = vrot.lane.b32.xlu0 %v908, 64
        %v910 = vpop.permute.xlu0 %909
        %v912 = vcombine.low %v827, %v796
        %v914 = vunpack.c.l.s4 1983009808
        %v915 = vunpack.c.0.s8 %v914
        %v916 = vlaneseq
        %v917 = vshrl.u32 %v916, 7
        %v918 = vsub.s32 %v915, %v917
        %v919 = vrot.slane %v912, %v918
        %v920 = vsel %vm589, %v839, %v850
        %v921 = vsel %vm589, %v859, %v870
        %v922 = vsel %vm589, %v879, %v890
        %v923 = vsel %vm589, %v899, %v910
        %v924 = vld [vmem:[%s6] sm:$0xff]
        %v925 = vld [vmem:[%s6 + $0x8] sm:$0xff]
        %v926 = vld [vmem:[%s6 + $0x10] sm:$0xff]
        %v927 = vld [vmem:[%s6 + $0x18] sm:$0xff]
        %v928 = vld [vmem:[%s6 + $0x20] sm:$0xff]
        %v929 = vld [vmem:[%s6 + $0x28] sm:$0xff]
        %v930 = vld [vmem:[%s6 + $0x30] sm:$0xff]
        %v931 = vld [vmem:[%s6 + $0x38] sm:$0xff]
        %v932 = vld [vmem:[%s6 + $0x40] sm:$0xff]
        %v933 = vld [vmem:[%s6 + $0x48] sm:$0xff]
        %v934 = vld [vmem:[%s6 + $0x50] sm:$0xff]
        %v935 = vld [vmem:[%s6 + $0x58] sm:$0xff]
        %v936 = vld [vmem:[%s6 + $0x60] sm:$0xff]
        %v937 = vld [vmem:[%s6 + $0x68] sm:$0xff]
        %v938 = vld [vmem:[%s6 + $0x70] sm:$0xff]
        %v939 = vld [vmem:[%s6 + $0x78] sm:$0xff]
        %v940 = vld [vmem:[%s6 + $0x80] sm:$0xff]
        %v941 = vld [vmem:[%s6 + $0x88] sm:$0xff]
        %v942 = vld [vmem:[%s6 + $0x90] sm:$0xff]
        %v943 = vld [vmem:[%s6 + $0x98] sm:$0xff]
        %v944 = vld [vmem:[%s6 + $0xa0] sm:$0xff]
        %v945 = vld [vmem:[%s6 + $0xa8] sm:$0xff]
        %v946 = vld [vmem:[%s6 + $0xb0] sm:$0xff]
        %v947 = vld [vmem:[%s6 + $0xb8] sm:$0xff]
        %v948 = vld [vmem:[%s6 + $0xc0] sm:$0xff]
        %v949 = vld [vmem:[%s6 + $0xc8] sm:$0xff]
        %v950 = vld [vmem:[%s6 + $0xd0] sm:$0xff]
        %v951 = vld [vmem:[%s6 + $0xd8] sm:$0xff]
        %v952 = vld [vmem:[%s6 + $0xe0] sm:$0xff]
        %v953 = vld [vmem:[%s6 + $0xe8] sm:$0xff]
        %v954 = vld [vmem:[%s6 + $0xf0] sm:$0xff]
        %v955 = vld [vmem:[%s6 + $0xf8] sm:$0xff]
        %v956 = vld [vmem:[%s6 + $0x100] sm:$0xff]
        %v957 = vld [vmem:[%s6 + $0x108] sm:$0xff]
        %v958 = vld [vmem:[%s6 + $0x110] sm:$0xff]
        %v959 = vld [vmem:[%s6 + $0x118] sm:$0xff]
        %v960 = vld [vmem:[%s6 + $0x120] sm:$0xff]
        %v961 = vld [vmem:[%s6 + $0x128] sm:$0xff]
        %v962 = vld [vmem:[%s6 + $0x130] sm:$0xff]
        %v963 = vld [vmem:[%s6 + $0x138] sm:$0xff]
        %v964 = vld [vmem:[%s6 + $0x140] sm:$0xff]
        %v965 = vld [vmem:[%s6 + $0x148] sm:$0xff]
        %v966 = vld [vmem:[%s6 + $0x150] sm:$0xff]
        %v967 = vld [vmem:[%s6 + $0x158] sm:$0xff]
        %v968 = vld [vmem:[%s6 + $0x160] sm:$0xff]
        %v969 = vld [vmem:[%s6 + $0x168] sm:$0xff]
        %v970 = vld [vmem:[%s6 + $0x170] sm:$0xff]
        %v971 = vld [vmem:[%s6 + $0x178] sm:$0xff]
        %v972 = vld [vmem:[%s6 + $0x180] sm:$0xff]
        %v973 = vld [vmem:[%s6 + $0x188] sm:$0xff]
        %v974 = vld [vmem:[%s6 + $0x190] sm:$0xff]
        %v975 = vld [vmem:[%s6 + $0x198] sm:$0xff]
        %v976 = vld [vmem:[%s6 + $0x1a0] sm:$0xff]
        %v977 = vld [vmem:[%s6 + $0x1a8] sm:$0xff]
        %v978 = vld [vmem:[%s6 + $0x1b0] sm:$0xff]
        %v979 = vld [vmem:[%s6 + $0x1b8] sm:$0xff]
        %v980 = vld [vmem:[%s6 + $0x1c0] sm:$0xff]
        %v981 = vld [vmem:[%s6 + $0x1c8] sm:$0xff]
        %v982 = vld [vmem:[%s6 + $0x1d0] sm:$0xff]
        %v983 = vld [vmem:[%s6 + $0x1d8] sm:$0xff]
        %v984 = vld [vmem:[%s6 + $0x1e0] sm:$0xff]
        %v985 = vld [vmem:[%s6 + $0x1e8] sm:$0xff]
        %v986 = vld [vmem:[%s6 + $0x1f0] sm:$0xff]
        %v987 = vld [vmem:[%s6 + $0x1f8] sm:$0xff]
        %v988 = vld [vmem:[%s6 + $0x200] sm:$0xff]
        %v989 = vld [vmem:[%s6 + $0x208] sm:$0xff]
        %v990 = vld [vmem:[%s6 + $0x210] sm:$0xff]
        %v991 = vld [vmem:[%s6 + $0x218] sm:$0xff]
        %v992 = vld [vmem:[%s6 + $0x220] sm:$0xff]
        %v993 = vld [vmem:[%s6 + $0x228] sm:$0xff]
        %v994 = vld [vmem:[%s6 + $0x230] sm:$0xff]
        %v995 = vld [vmem:[%s6 + $0x238] sm:$0xff]
        %v996 = vsel %vm589, %v919, 0
        %998 = vmatprep.subr.mxu0 0.0
        %999 = vmatpush1.msra.mxu0 %v939
        %1000 = vmatprep.subr.mxu0 0.0
        %1001 = vmatpush1.msra.mxu0 %v938
        %1002 = vmatprep.subr.mxu0 0.0
        %1003 = vmatpush1.msra.mxu0 %v937
        %1004 = vmatprep.subr.mxu0 0.0
        %1005 = vmatpush1.msra.mxu0 %v936
        %1006 = vmatprep.subr.mxu0 0.0
        %1007 = vmatpush1.msra.mxu0 %v935
        %1008 = vmatprep.subr.mxu0 0.0
        %1009 = vmatpush1.msra.mxu0 %v934
        %1010 = vmatprep.subr.mxu0 0.0
        %1011 = vmatpush1.msra.mxu0 %v933
        %1012 = vmatprep.subr.mxu0 0.0
        %1013 = vmatpush1.msra.mxu0 %v932
        %1014 = vmatprep.subr.mxu0 0.0
        %1015 = vmatpush1.msra.mxu0 %v931
        %1016 = vmatprep.subr.mxu0 0.0
        %1017 = vmatpush1.msra.mxu0 %v930
        %1018 = vmatprep.subr.mxu0 0.0
        %1019 = vmatpush1.msra.mxu0 %v929
        %1020 = vmatprep.subr.mxu0 0.0
        %1021 = vmatpush1.msra.mxu0 %v928
        %1022 = vmatprep.subr.mxu0 0.0
        %1023 = vmatpush1.msra.mxu0 %v927
        %1024 = vmatprep.subr.mxu0 0.0
        %1025 = vmatpush1.msra.mxu0 %v926
        %1026 = vmatprep.subr.mxu0 0.0
        %1027 = vmatpush1.msra.mxu0 %v925
        %1028 = vmatprep.subr.mxu0 0.0
        %1029 = vmatpush1.msra.mxu0 %v924
        %1030 = vmatprep.subr.mxu0 0.0
        %1031 = vmatpush2.msra.mxu0 %v955
        %1032 = vmatprep.subr.mxu0 0.0
        %1033 = vmatpush2.msra.mxu0 %v954
        %1034 = vmatprep.subr.mxu0 0.0
        %1035 = vmatpush2.msra.mxu0 %v953
        %1036 = vmatprep.subr.mxu0 0.0
        %1037 = vmatpush2.msra.mxu0 %v952
        %1038 = vmatprep.subr.mxu0 0.0
        %1039 = vmatpush2.msra.mxu0 %v951
        %1040 = vmatprep.subr.mxu0 0.0
        %1041 = vmatpush2.msra.mxu0 %v950
        %1042 = vmatprep.subr.mxu0 0.0
        %1043 = vmatpush2.msra.mxu0 %v949
        %1044 = vmatprep.subr.mxu0 0.0
        %1045 = vmatpush2.msra.mxu0 %v948
        %1046 = vmatprep.subr.mxu0 0.0
        %1047 = vmatpush2.msra.mxu0 %v947
        %1048 = vmatprep.subr.mxu0 0.0
        %1049 = vmatpush2.msra.mxu0 %v946
        %1050 = vmatprep.subr.mxu0 0.0
        %1051 = vmatpush2.msra.mxu0 %v945
        %1052 = vmatprep.subr.mxu0 0.0
        %1053 = vmatpush2.msra.mxu0 %v944
        %1054 = vmatprep.subr.mxu0 0.0
        %1055 = vmatpush2.msra.mxu0 %v943
        %1056 = vmatprep.subr.mxu0 0.0
        %1057 = vmatpush2.msra.mxu0 %v942
        %1058 = vmatprep.subr.mxu0 0.0
        %1059 = vmatpush2.msra.mxu0 %v941
        %1060 = vmatprep.subr.mxu0 0.0
        %1061 = vmatpush2.msra.mxu0 %v940
        %1062 = vmatprep.mubr.f32.mxu0 %v921
        %1063 = vmatmul.mubr.f32.gmra.mxu0 %v920
        %v1064 = vpop.f32.mrf.mxu0
        %v1065 = vadd.f32 0.0, %v1064
        %v1066 = vpop.f32.mrf.mxu0
        %1067 = vdwg.mxu0
        %1068 = vmatprep.subr.mxu0 0.0
        %1069 = vmatpush1.msra.mxu0 %v971
        %1070 = vmatprep.subr.mxu0 0.0
        %1071 = vmatpush1.msra.mxu0 %v970
        %1072 = vmatprep.subr.mxu0 0.0
        %1073 = vmatpush1.msra.mxu0 %v969
        %1074 = vmatprep.subr.mxu0 0.0
        %1075 = vmatpush1.msra.mxu0 %v968
        %1076 = vmatprep.subr.mxu0 0.0
        %1077 = vmatpush1.msra.mxu0 %v967
        %1078 = vmatprep.subr.mxu0 0.0
        %1079 = vmatpush1.msra.mxu0 %v966
        %1080 = vmatprep.subr.mxu0 0.0
        %1081 = vmatpush1.msra.mxu0 %v965
        %1082 = vmatprep.subr.mxu0 0.0
        %1083 = vmatpush1.msra.mxu0 %v964
        %1084 = vmatprep.subr.mxu0 0.0
        %1085 = vmatpush1.msra.mxu0 %v963
        %1086 = vmatprep.subr.mxu0 0.0
        %1087 = vmatpush1.msra.mxu0 %v962
        %1088 = vmatprep.subr.mxu0 0.0
        %1089 = vmatpush1.msra.mxu0 %v961
        %1090 = vmatprep.subr.mxu0 0.0
        %1091 = vmatpush1.msra.mxu0 %v960
        %1092 = vmatprep.subr.mxu0 0.0
        %1093 = vmatpush1.msra.mxu0 %v959
        %1094 = vmatprep.subr.mxu0 0.0
        %1095 = vmatpush1.msra.mxu0 %v958
        %1096 = vmatprep.subr.mxu0 0.0
        %1097 = vmatpush1.msra.mxu0 %v957
        %1098 = vmatprep.subr.mxu0 0.0
        %1099 = vmatpush1.msra.mxu0 %v956
        %1100 = vmatprep.subr.mxu0 0.0
        %1101 = vmatpush2.msra.mxu0 %v987
        %1102 = vmatprep.subr.mxu0 0.0
        %1103 = vmatpush2.msra.mxu0 %v986
        %1104 = vmatprep.subr.mxu0 0.0
        %1105 = vmatpush2.msra.mxu0 %v985
        %1106 = vmatprep.subr.mxu0 0.0
        %1107 = vmatpush2.msra.mxu0 %v984
        %1108 = vmatprep.subr.mxu0 0.0
        %1109 = vmatpush2.msra.mxu0 %v983
        %1110 = vmatprep.subr.mxu0 0.0
        %1111 = vmatpush2.msra.mxu0 %v982
        %1112 = vmatprep.subr.mxu0 0.0
        %1113 = vmatpush2.msra.mxu0 %v981
        %1114 = vmatprep.subr.mxu0 0.0
        %1115 = vmatpush2.msra.mxu0 %v980
        %1116 = vmatprep.subr.mxu0 0.0
        %1117 = vmatpush2.msra.mxu0 %v979
        %1118 = vmatprep.subr.mxu0 0.0
        %1119 = vmatpush2.msra.mxu0 %v978
        %1120 = vmatprep.subr.mxu0 0.0
        %1121 = vmatpush2.msra.mxu0 %v977
        %1122 = vmatprep.subr.mxu0 0.0
        %1123 = vmatpush2.msra.mxu0 %v976
        %1124 = vmatprep.subr.mxu0 0.0
        %1125 = vmatpush2.msra.mxu0 %v975
        %1126 = vmatprep.subr.mxu0 0.0
        %1127 = vmatpush2.msra.mxu0 %v974
        %1128 = vmatprep.subr.mxu0 0.0
        %1129 = vmatpush2.msra.mxu0 %v973
        %1130 = vmatprep.subr.mxu0 0.0
        %1131 = vmatpush2.msra.mxu0 %v972
        %1132 = vmatprep.mubr.f32.mxu0 %v923
        %1133 = vmatmul.mubr.f32.gmra.mxu0 %v922
        %v1134 = vpop.f32.mrf.mxu0
        %v1135 = vadd.f32 %v1065, %v1134
        %v1136 = vpop.f32.mrf.mxu0
        %1137 = vdwg.mxu0
        %1138 = vmatprep.subr.mxu0 0.0
        %1139 = vmatpush1.msra.mxu0 0.0
        %1140 = vmatprep.subr.mxu0 0.0
        %1141 = vmatpush1.msra.mxu0 0.0
        %1142 = vmatprep.subr.mxu0 0.0
        %1143 = vmatpush1.msra.mxu0 0.0
        %1144 = vmatprep.subr.mxu0 0.0
        %1145 = vmatpush1.msra.mxu0 0.0
        %1146 = vmatprep.subr.mxu0 0.0
        %1147 = vmatpush1.msra.mxu0 0.0
        %1148 = vmatprep.subr.mxu0 0.0
        %1149 = vmatpush1.msra.mxu0 0.0
        %1150 = vmatprep.subr.mxu0 0.0
        %1151 = vmatpush1.msra.mxu0 0.0
        %1152 = vmatprep.subr.mxu0 0.0
        %1153 = vmatpush1.msra.mxu0 0.0
        %1154 = vmatprep.subr.mxu0 0.0
        %1155 = vmatpush1.msra.mxu0 %v995
        %1156 = vmatprep.subr.mxu0 0.0
        %1157 = vmatpush1.msra.mxu0 %v994
        %1158 = vmatprep.subr.mxu0 0.0
        %1159 = vmatpush1.msra.mxu0 %v993
        %1160 = vmatprep.subr.mxu0 0.0
        %1161 = vmatpush1.msra.mxu0 %v992
        %1162 = vmatprep.subr.mxu0 0.0
        %1163 = vmatpush1.msra.mxu0 %v991
        %1164 = vmatprep.subr.mxu0 0.0
        %1165 = vmatpush1.msra.mxu0 %v990
        %1166 = vmatprep.subr.mxu0 0.0
        %1167 = vmatpush1.msra.mxu0 %v989
        %1168 = vmatprep.subr.mxu0 0.0
        %1169 = vmatpush1.msra.mxu0 %v988
        %1170 = vmatprep.subr.mxu0 0.0
        %1171 = vmatpush2.msra.mxu0 0.0
        %1172 = vmatprep.subr.mxu0 0.0
        %1173 = vmatpush2.msra.mxu0 0.0
        %1174 = vmatprep.subr.mxu0 0.0
        %1175 = vmatpush2.msra.mxu0 0.0
        %1176 = vmatprep.subr.mxu0 0.0
        %1177 = vmatpush2.msra.mxu0 0.0
        %1178 = vmatprep.subr.mxu0 0.0
        %1179 = vmatpush2.msra.mxu0 0.0
        %1180 = vmatprep.subr.mxu0 0.0
        %1181 = vmatpush2.msra.mxu0 0.0
        %1182 = vmatprep.subr.mxu0 0.0
        %1183 = vmatpush2.msra.mxu0 0.0
        %1184 = vmatprep.subr.mxu0 0.0
        %1185 = vmatpush2.msra.mxu0 0.0
        %1186 = vmatprep.subr.mxu0 0.0
        %1187 = vmatpush2.msra.mxu0 0.0
        %1188 = vmatprep.subr.mxu0 0.0
        %1189 = vmatpush2.msra.mxu0 0.0
        %1190 = vmatprep.subr.mxu0 0.0
        %1191 = vmatpush2.msra.mxu0 0.0
        %1192 = vmatprep.subr.mxu0 0.0
        %1193 = vmatpush2.msra.mxu0 0.0
        %1194 = vmatprep.subr.mxu0 0.0
        %1195 = vmatpush2.msra.mxu0 0.0
        %1196 = vmatprep.subr.mxu0 0.0
        %1197 = vmatpush2.msra.mxu0 0.0
        %1198 = vmatprep.subr.mxu0 0.0
        %1199 = vmatpush2.msra.mxu0 0.0
        %1200 = vmatprep.subr.mxu0 0.0
        %1201 = vmatpush2.msra.mxu0 0.0
        %1202 = vmatprep.mubr.f32.mxu0 0.0
        %1203 = vmatmul.mubr.f32.gmra.mxu0 %v996
        %v1204 = vpop.f32.mrf.mxu0
        %v1205 = vadd.f32 %v1135, %v1204
        %v1206 = vpop.f32.mrf.mxu0
        %1207 = vdwg.mxu0
        %v1209 = vsel %vm505, %v1205, 0
        %1211 = vmatprep.subr.mxu0 0.0
        %1212 = vmatpush1.msra.mxu0 0.0
        %1213 = vmatprep.subr.mxu0 0.0
        %1214 = vmatpush1.msra.mxu0 0.0
        %1215 = vmatprep.subr.mxu0 0.0
        %1216 = vmatpush1.msra.mxu0 0.0
        %1217 = vmatprep.subr.mxu0 0.0
        %1218 = vmatpush1.msra.mxu0 0.0
        %1219 = vmatprep.subr.mxu0 0.0
        %1220 = vmatpush1.msra.mxu0 0.0
        %1221 = vmatprep.subr.mxu0 0.0
        %1222 = vmatpush1.msra.mxu0 0.0
        %1223 = vmatprep.subr.mxu0 0.0
        %1224 = vmatpush1.msra.mxu0 0.0
        %1225 = vmatprep.subr.mxu0 0.0
        %1226 = vmatpush1.msra.mxu0 0.0
        %1227 = vmatprep.subr.mxu0 0.0
        %1228 = vmatpush1.msra.mxu0 0.0
        %1229 = vmatprep.subr.mxu0 0.0
        %1230 = vmatpush1.msra.mxu0 0.0
        %1231 = vmatprep.subr.mxu0 0.0
        %1232 = vmatpush1.msra.mxu0 0.0
        %1233 = vmatprep.subr.mxu0 0.0
        %1234 = vmatpush1.msra.mxu0 0.0
        %1235 = vmatprep.subr.mxu0 0.0
        %1236 = vmatpush1.msra.mxu0 0.0
        %1237 = vmatprep.subr.mxu0 0.0
        %1238 = vmatpush1.msra.mxu0 0.0
        %1239 = vmatprep.subr.mxu0 0.0
        %1240 = vmatpush1.msra.mxu0 0.0
        %1241 = vmatprep.subr.mxu0 0.0
        %1242 = vmatpush1.msra.mxu0 %v1209
        %1243 = vmatprep.subr.mxu0 0.0
        %1244 = vmatpush2.msra.mxu0 0.0
        %1245 = vmatprep.subr.mxu0 0.0
        %1246 = vmatpush2.msra.mxu0 0.0
        %1247 = vmatprep.subr.mxu0 0.0
        %1248 = vmatpush2.msra.mxu0 0.0
        %1249 = vmatprep.subr.mxu0 0.0
        %1250 = vmatpush2.msra.mxu0 0.0
        %1251 = vmatprep.subr.mxu0 0.0
        %1252 = vmatpush2.msra.mxu0 0.0
        %1253 = vmatprep.subr.mxu0 0.0
        %1254 = vmatpush2.msra.mxu0 0.0
        %1255 = vmatprep.subr.mxu0 0.0
        %1256 = vmatpush2.msra.mxu0 0.0
        %1257 = vmatprep.subr.mxu0 0.0
        %1258 = vmatpush2.msra.mxu0 0.0
        %1259 = vmatprep.subr.mxu0 0.0
        %1260 = vmatpush2.msra.mxu0 0.0
        %1261 = vmatprep.subr.mxu0 0.0
        %1262 = vmatpush2.msra.mxu0 0.0
        %1263 = vmatprep.subr.mxu0 0.0
        %1264 = vmatpush2.msra.mxu0 0.0
        %1265 = vmatprep.subr.mxu0 0.0
        %1266 = vmatpush2.msra.mxu0 0.0
        %1267 = vmatprep.subr.mxu0 0.0
        %1268 = vmatpush2.msra.mxu0 0.0
        %1269 = vmatprep.subr.mxu0 0.0
        %1270 = vmatpush2.msra.mxu0 0.0
        %1271 = vmatprep.subr.mxu0 0.0
        %1272 = vmatpush2.msra.mxu0 0.0
        %1273 = vmatprep.subr.mxu0 0.0
        %1274 = vmatpush2.msra.mxu0 0.0
        %1275 = vmatprep.mubr.f32.mxu0 0.0
        %1276 = vmatmul.mubr.f32.gmra.mxu0 %v503
        %v1277 = vpop.f32.mrf.mxu0
        %v1278 = vadd.f32 0.0, %v1277
        %v1279 = vpop.f32.mrf.mxu0
        %1280 = vdwg.mxu0
        %v1281 = vmul.f32 %v1278, 0.25
        %v1282 = vld [vmem:[%s7] sm:$0xff]
        %v1283 = vld [vmem:[%s7 + $0x8] sm:$0xff]
        %v1284 = vld [vmem:[%s8] sm:$0x1]
        %v1286 = vsel %vm667, %v1281, 0
        %1288 = vmatprep.subr.mxu0 0.0
        %1289 = vmatpush1.msra.mxu0 0.0
        %1290 = vmatprep.subr.mxu0 0.0
        %1291 = vmatpush1.msra.mxu0 0.0
        %1292 = vmatprep.subr.mxu0 0.0
        %1293 = vmatpush1.msra.mxu0 0.0
        %1294 = vmatprep.subr.mxu0 0.0
        %1295 = vmatpush1.msra.mxu0 0.0
        %1296 = vmatprep.subr.mxu0 0.0
        %1297 = vmatpush1.msra.mxu0 0.0
        %1298 = vmatprep.subr.mxu0 0.0
        %1299 = vmatpush1.msra.mxu0 0.0
        %1300 = vmatprep.subr.mxu0 0.0
        %1301 = vmatpush1.msra.mxu0 0.0
        %1302 = vmatprep.subr.mxu0 0.0
        %1303 = vmatpush1.msra.mxu0 0.0
        %1304 = vmatprep.subr.mxu0 0.0
        %1305 = vmatpush1.msra.mxu0 0.0
        %1306 = vmatprep.subr.mxu0 0.0
        %1307 = vmatpush1.msra.mxu0 0.0
        %1308 = vmatprep.subr.mxu0 0.0
        %1309 = vmatpush1.msra.mxu0 0.0
        %1310 = vmatprep.subr.mxu0 0.0
        %1311 = vmatpush1.msra.mxu0 0.0
        %1312 = vmatprep.subr.mxu0 0.0
        %1313 = vmatpush1.msra.mxu0 0.0
        %1314 = vmatprep.subr.mxu0 0.0
        %1315 = vmatpush1.msra.mxu0 0.0
        %1316 = vmatprep.subr.mxu0 0.0
        %1317 = vmatpush1.msra.mxu0 %v1283
        %1318 = vmatprep.subr.mxu0 0.0
        %1319 = vmatpush1.msra.mxu0 %v1282
        %1320 = vmatprep.subr.mxu0 0.0
        %1321 = vmatpush2.msra.mxu0 0.0
        %1322 = vmatprep.subr.mxu0 0.0
        %1323 = vmatpush2.msra.mxu0 0.0
        %1324 = vmatprep.subr.mxu0 0.0
        %1325 = vmatpush2.msra.mxu0 0.0
        %1326 = vmatprep.subr.mxu0 0.0
        %1327 = vmatpush2.msra.mxu0 0.0
        %1328 = vmatprep.subr.mxu0 0.0
        %1329 = vmatpush2.msra.mxu0 0.0
        %1330 = vmatprep.subr.mxu0 0.0
        %1331 = vmatpush2.msra.mxu0 0.0
        %1332 = vmatprep.subr.mxu0 0.0
        %1333 = vmatpush2.msra.mxu0 0.0
        %1334 = vmatprep.subr.mxu0 0.0
        %1335 = vmatpush2.msra.mxu0 0.0
        %1336 = vmatprep.subr.mxu0 0.0
        %1337 = vmatpush2.msra.mxu0 0.0
        %1338 = vmatprep.subr.mxu0 0.0
        %1339 = vmatpush2.msra.mxu0 0.0
        %1340 = vmatprep.subr.mxu0 0.0
        %1341 = vmatpush2.msra.mxu0 0.0
        %1342 = vmatprep.subr.mxu0 0.0
        %1343 = vmatpush2.msra.mxu0 0.0
        %1344 = vmatprep.subr.mxu0 0.0
        %1345 = vmatpush2.msra.mxu0 0.0
        %1346 = vmatprep.subr.mxu0 0.0
        %1347 = vmatpush2.msra.mxu0 0.0
        %1348 = vmatprep.subr.mxu0 0.0
        %1349 = vmatpush2.msra.mxu0 0.0
        %1350 = vmatprep.subr.mxu0 0.0
        %1351 = vmatpush2.msra.mxu0 0.0
        %1352 = vmatprep.mubr.f32.mxu0 0.0
        %1353 = vmatmul.mubr.f32.gmra.mxu0 %v1286
        %v1354 = vpop.f32.mrf.mxu0
        %v1355 = vadd.f32 %v1284, %v1354
        %v1356 = vpop.f32.mrf.mxu0
        %1357 = vdwg.mxu0
        %v1358 = vmax.f32 %v1355, 0.0
        %v1359 = vld [vmem:[%s9] sm:$0xf]
        %v1360 = vld [vmem:[%s10] sm:$0x1]
        %v1362 = vsel %vm501, %v1358, 0
        %v1365 = vsel %vm505, %v1359, 0
        %1367 = vmatprep.subr.mxu0 0.0
        %1368 = vmatpush1.msra.mxu0 0.0
        %1369 = vmatprep.subr.mxu0 0.0
        %1370 = vmatpush1.msra.mxu0 0.0
        %1371 = vmatprep.subr.mxu0 0.0
        %1372 = vmatpush1.msra.mxu0 0.0
        %1373 = vmatprep.subr.mxu0 0.0
        %1374 = vmatpush1.msra.mxu0 0.0
        %1375 = vmatprep.subr.mxu0 0.0
        %1376 = vmatpush1.msra.mxu0 0.0
        %1377 = vmatprep.subr.mxu0 0.0
        %1378 = vmatpush1.msra.mxu0 0.0
        %1379 = vmatprep.subr.mxu0 0.0
        %1380 = vmatpush1.msra.mxu0 0.0
        %1381 = vmatprep.subr.mxu0 0.0
        %1382 = vmatpush1.msra.mxu0 0.0
        %1383 = vmatprep.subr.mxu0 0.0
        %1384 = vmatpush1.msra.mxu0 0.0
        %1385 = vmatprep.subr.mxu0 0.0
        %1386 = vmatpush1.msra.mxu0 0.0
        %1387 = vmatprep.subr.mxu0 0.0
        %1388 = vmatpush1.msra.mxu0 0.0
        %1389 = vmatprep.subr.mxu0 0.0
        %1390 = vmatpush1.msra.mxu0 0.0
        %1391 = vmatprep.subr.mxu0 0.0
        %1392 = vmatpush1.msra.mxu0 0.0
        %1393 = vmatprep.subr.mxu0 0.0
        %1394 = vmatpush1.msra.mxu0 0.0
        %1395 = vmatprep.subr.mxu0 0.0
        %1396 = vmatpush1.msra.mxu0 0.0
        %1397 = vmatprep.subr.mxu0 0.0
        %1398 = vmatpush1.msra.mxu0 %v1365
        %1399 = vmatprep.subr.mxu0 0.0
        %1400 = vmatpush2.msra.mxu0 0.0
        %1401 = vmatprep.subr.mxu0 0.0
        %1402 = vmatpush2.msra.mxu0 0.0
        %1403 = vmatprep.subr.mxu0 0.0
        %1404 = vmatpush2.msra.mxu0 0.0
        %1405 = vmatprep.subr.mxu0 0.0
        %1406 = vmatpush2.msra.mxu0 0.0
        %1407 = vmatprep.subr.mxu0 0.0
        %1408 = vmatpush2.msra.mxu0 0.0
        %1409 = vmatprep.subr.mxu0 0.0
        %1410 = vmatpush2.msra.mxu0 0.0
        %1411 = vmatprep.subr.mxu0 0.0
        %1412 = vmatpush2.msra.mxu0 0.0
        %1413 = vmatprep.subr.mxu0 0.0
        %1414 = vmatpush2.msra.mxu0 0.0
        %1415 = vmatprep.subr.mxu0 0.0
        %1416 = vmatpush2.msra.mxu0 0.0
        %1417 = vmatprep.subr.mxu0 0.0
        %1418 = vmatpush2.msra.mxu0 0.0
        %1419 = vmatprep.subr.mxu0 0.0
        %1420 = vmatpush2.msra.mxu0 0.0
        %1421 = vmatprep.subr.mxu0 0.0
        %1422 = vmatpush2.msra.mxu0 0.0
        %1423 = vmatprep.subr.mxu0 0.0
        %1424 = vmatpush2.msra.mxu0 0.0
        %1425 = vmatprep.subr.mxu0 0.0
        %1426 = vmatpush2.msra.mxu0 0.0
        %1427 = vmatprep.subr.mxu0 0.0
        %1428 = vmatpush2.msra.mxu0 0.0
        %1429 = vmatprep.subr.mxu0 0.0
        %1430 = vmatpush2.msra.mxu0 0.0
        %1431 = vmatprep.mubr.f32.mxu0 0.0
        %1432 = vmatmul.mubr.f32.gmra.mxu0 %v1362
        %v1433 = vpop.f32.mrf.mxu0
        %v1434 = vadd.f32 %v1360, %v1433
        %v1435 = vpop.f32.mrf.mxu0
        %1436 = vdwg.mxu0
        %v1437 = vmul.f32 %v1434, 1.2
        %v1438 = vadd.f32 %v1437, 3.0
        %v1439 = vmax.f32 %v1438, 0.0
        %v1440 = vmin.f32 %v1439, 6.0
        %v1441 = vmul.f32 %v1440, 0.16666667
        %v1442 = vadd.f32 %v1441, 1.0
        %v1443 = vlaneseq
        %v1444 = vshrl.u32 %v1443, 7
        %v1445 = vsub.s32 0, %v1444
        %v1446 = vrot.slane %v1442, %v1445
        %v1447 = vmul.f32 %v1205, %v1446
        %v1450 = vunpack.c.l.s4 1983009808
        %v1451 = vunpack.c.0.s8 %v1450
        %v1452 = vlaneseq
        %v1453 = vshrl.u32 %v1452, 7
        %v1454 = vsub.s32 %v1451, %v1453
        %v1455 = vrot.slane %v1447, %v1454
        %v1456 = vcombine.high %v1455, %v1455
        %v1460 = vunpack.c.l.s4 1983009808
        %v1461 = vunpack.c.0.s8 %v1460
        %v1462 = vlaneseq
        %v1463 = vshrl.u32 %v1462, 7
        %v1464 = vsub.s32 %v1461, %v1463
        %v1465 = vrot.slane %v1455, %v1464
        %v1467 = vunpack.c.l.s4 1983009808
        %v1468 = vunpack.c.0.s8 %v1467
        %v1469 = vlaneseq
        %v1470 = vshrl.u32 %v1469, 7
        %v1471 = vsub.s32 %v1468, %v1470
        %v1472 = vrot.slane %v1456, %v1471
        %1473 = vrot.lane.b32.xlu0 %v1465, 16
        %v1474 = vpop.permute.xlu0 %1473
        %1475 = vrot.lane.b32.xlu0 %v1472, 16
        %v1476 = vpop.permute.xlu0 %1475
        %1479 = vrot.lane.b32.xlu0 %v1465, 32
        %v1480 = vpop.permute.xlu0 %1479
        %1481 = vrot.lane.b32.xlu0 %v1472, 32
        %v1482 = vpop.permute.xlu0 %1481
        %1485 = vrot.lane.b32.xlu0 %v1465, 48
        %v1486 = vpop.permute.xlu0 %1485
        %1487 = vrot.lane.b32.xlu0 %v1472, 48
        %v1488 = vpop.permute.xlu0 %1487
        %1491 = vrot.lane.b32.xlu0 %v1465, 64
        %v1492 = vpop.permute.xlu0 %1491
        %1493 = vrot.lane.b32.xlu0 %v1472, 64
        %v1494 = vpop.permute.xlu0 %1493
        %1497 = vrot.lane.b32.xlu0 %v1465, 80
        %v1498 = vpop.permute.xlu0 %1497
        %1499 = vrot.lane.b32.xlu0 %v1472, 80
        %v1500 = vpop.permute.xlu0 %1499
        %1503 = vrot.lane.b32.xlu0 %v1465, 96
        %v1504 = vpop.permute.xlu0 %1503
        %1505 = vrot.lane.b32.xlu0 %v1472, 96
        %v1506 = vpop.permute.xlu0 %1505
        %1509 = vrot.lane.b32.xlu0 %v1465, 112
        %v1510 = vpop.permute.xlu0 %1509
        %1511 = vrot.lane.b32.xlu0 %v1472, 112
        %v1512 = vpop.permute.xlu0 %1511
        %v1515 = vsel %vm667, %v1455, %v1474
        %v1516 = vsel %vm667, %v1456, %v1476
        %vm1517 = vcmask 261120
        %v1518 = vsel %vm1517, %v1515, %v1480
        %v1519 = vsel %vm1517, %v1516, %v1482
        %v1520 = vsel %vm427, %v1518, %v1486
        %v1521 = vsel %vm427, %v1519, %v1488
        %v1522 = vsel %vm589, %v1520, %v1492
        %v1523 = vsel %vm589, %v1521, %v1494
        %vm1524 = vcmask 654336
        %v1525 = vsel %vm1524, %v1522, %v1498
        %v1526 = vsel %vm1524, %v1523, %v1500
        %vm1527 = vcmask 785408
        %v1528 = vsel %vm1527, %v1525, %v1504
        %v1529 = vsel %vm1527, %v1526, %v1506
        %vm1530 = vcmask 916480
        %v1531 = vsel %vm1530, %v1528, %v1510
        %v1532 = vsel %vm1530, %v1529, %v1512
        %1533 = vst [vmem:[%s415] sm:$0x3] %v1531
        %1534 = vst [vmem:[%s415 + $0x2] sm:$0x3] %v1531
        %1535 = vst [vmem:[%s415 + $0x4] sm:$0x3] %v1531
        %1536 = vst [vmem:[%s415 + $0x6] sm:$0x3] %v1531
        %1537 = vst [vmem:[%s415 + $0x8] sm:$0x3] %v1531
        %1538 = vst [vmem:[%s415 + $0xa] sm:$0x3] %v1531
        %1539 = vst [vmem:[%s415 + $0xc] sm:$0x3] %v1531
        %1540 = vst [vmem:[%s415 + $0xe] sm:$0x3] %v1531
        %1541 = vst [vmem:[%s415 + $0x10] sm:$0x3] %v1532
        %1542 = vst [vmem:[%s415 + $0x12] sm:$0x3] %v1532
        %1543 = vst [vmem:[%s415 + $0x14] sm:$0x3] %v1532
        %1544 = vst [vmem:[%s415 + $0x16] sm:$0x3] %v1532
        %1545 = vst [vmem:[%s415 + $0x18] sm:$0x3] %v1532
        %1546 = vst [vmem:[%s415 + $0x1a] sm:$0x3] %v1532
        %1547 = vst [vmem:[%s415 + $0x1c] sm:$0x3] %v1532
        %1548 = vst [vmem:[%s415 + $0x1e] sm:$0x3] %v1532
        %s1549 = sand.u32 %s274, 1
        %s1550 = scalar_lea.sflag [#allocation3], %s1549
        %s1551 = sand.u32 %s274, 1
        %s1552 = smul.addr %s1551, 4
        %s1553 = scalar_lea.vmem [#allocation2], %s1552
        %s1554 = sand.u32 %s300, 1
        %s1555 = scalar_lea.sflag [#allocation5], %s1554
        %s1556 = sand.u32 %s300, 1
        %s1557 = smul.addr %s1556, 32
        %s1558 = scalar_lea.vmem [#allocation4], %s1557
        // Predicated region
        $region65: #{tpu_custom_call.1} parent=63 // pred_check
          %p1559 = pneg %p284
        $region66: #{tpu_custom_call.1} parent=63 // pred_check_branch
          %1561 = sbr.rel (%p1559) target = $region68
        $region67: #{tpu_custom_call.1} parent=63 // pred_region
          %s1563 = ssub.s32 64, 64
          %1564 = vsyncadd %s1550, %s1563
          %s1565 = smul.addr %s30, 64
          %s1566 = scalar_lea.hbm %s11, %s1565
          %s1568 = sshll.u32 %s1553, 4
          %s1569 = int_to_ptr.vmem [resolvable:$true] %s1568
          %1571 = dma.vmem_to_hbm [thread:$0]  %s1569, 64, %s1566, %s1550
        $region68: #{tpu_custom_call.1} parent=63 // pred_fallthru
          _
        // Predicated region
        $region69: #{tpu_custom_call.1} parent=63 // pred_check
          %p1572 = pneg %p310
        $region70: #{tpu_custom_call.1} parent=63 // pred_check_branch
          %1574 = sbr.rel (%p1572) target = $region72
        $region71: #{tpu_custom_call.1} parent=63 // pred_region
          %s1576 = ssub.s32 512, 512
          %1577 = vsyncadd %s1555, %s1576
          %s1578 = smul.addr %s30, 16
          %s1579 = smul.addr %s1578, 32
          %s1580 = scalar_lea.hbm %s12, %s1579
          %s1581 = sshll.u32 %s1558, 4
          %s1582 = int_to_ptr.vmem [resolvable:$true] %s1581
          %1587 = dma.vmem_to_hbm [thread:$0]  %s1582, 512, %s1580, %s1555, 32, 32, 2
        $region72: #{tpu_custom_call.1} parent=63 // pred_fallthru
          _
      $region64: #{tpu_custom_call.1} parent=5 // pred_fallthru
        _
      %p1588 = scmp.le.s32.totalorder 2, %s25
      // Predicated region
      $region73: #{tpu_custom_call.1} parent=5 // pred_check
        %p1589 = pneg %p1588
      $region74: #{tpu_custom_call.1} parent=5 // pred_check_branch
        %1591 = sbr.rel (%p1589) target = $region76
      $region75: #{tpu_custom_call.1} parent=5 // pred_region
        %s1592 = ssub.s32 %s25, 2
        // Predicated region
        $region77: #{tpu_custom_call.1} parent=75 // pred_check
          %p1593 = pneg %p290
        $region78: #{tpu_custom_call.1} parent=75 // pred_check_branch
          %1595 = sbr.rel (%p1593) target = $region80
        $region79: #{tpu_custom_call.1} parent=75 // pred_region
          %s1596 = sand.u32 %s275, 1
          %s1597 = scalar_lea.sflag [#allocation3], %s1596
          %s1598 = sand.u32 %s275, 1
          %s1599 = smul.addr %s1598, 4
          %s1600 = scalar_lea.vmem [#allocation2], %s1599
          %1601 = dma.done %s1597, 64
        $region80: #{tpu_custom_call.1} parent=75 // pred_fallthru
          _
        // Predicated region
        $region81: #{tpu_custom_call.1} parent=75 // pred_check
          %p1602 = pneg %p316
        $region82: #{tpu_custom_call.1} parent=75 // pred_check_branch
          %1604 = sbr.rel (%p1602) target = $region84
        $region83: #{tpu_custom_call.1} parent=75 // pred_region
          %s1605 = sand.u32 %s301, 1
          %s1606 = scalar_lea.sflag [#allocation5], %s1605
          %s1607 = sand.u32 %s301, 1
          %s1608 = smul.addr %s1607, 32
          %s1609 = scalar_lea.vmem [#allocation4], %s1608
          %1610 = dma.done %s1606, 512
        $region84: #{tpu_custom_call.1} parent=75 // pred_fallthru
          _
      $region76: #{tpu_custom_call.1} parent=5 // pred_fallthru
        _
    $region6: #{tpu_custom_call.1} parent=1 // loop_footer
      %s29 = sadd.s32 1, %s25
    $region7: #{tpu_custom_call.1} parent=1 // loop_footer_branch
      %24 = sbr.rel target = $region3
    $region8: #{tpu_custom_call.1} parent=1 // loop_exit
      _
    %1611 = vsyncpa [#allocation3], 1
    %s1612 = scalar_lea.sflag [#allocation3], 1
    %1613 = vsyncpa %s1612, 1
    %1614 = vsyncpa [#allocation5], 1
    %s1615 = scalar_lea.sflag [#allocation5], 1
    %1616 = vsyncpa %s1615, 1

</llo_original>
